<compile_context>
chip_gen: v6e
topology: v6e:2x2x1
jax: 0.10.0
libtpu: 0.0.40
codegen_flags: <defaults>
</compile_context>

<pallas_src>
import functools

import jax
import jax.numpy as jnp
from jax.experimental import pallas as pl
from jax.experimental.pallas import tpu as pltpu


def _round_up(x, m):
    return (x + m - 1) // m * m


def rnn_decoder_kernel(
    enc_ref, tgt_ref, h0_ref, c0_ref, emb_tbl_ref,
    attn1_w_ref, attn1_b_ref, attn2_w_ref, attn2_b_ref,
    comb_w_ref, comb_b_ref,
    w_ih_ref, w_hh_ref, b_lstm_ref,
    out_w_ref, out_b_ref,
    logits_ref, h_out_ref, c_out_ref,
):
    BT, S, E2 = enc_ref.shape
    H = h0_ref.shape[1]
    NUM_NOTES, EMB = emb_tbl_ref.shape

    enc3 = enc_ref[...]                       # (BT, S, E2)
    enc2 = enc3.reshape(BT * S, E2)           # layout no-op when S % 8 == 0
    h = h0_ref[...]                           # (BT, H)
    c = c0_ref[...]                           # (BT, H)

    # ---------------- attention (concat-free split matmuls) ----------------
    # PyTorch concat order is [hidden, enc]: attn1 rows [:H] act on the hidden
    # state, rows [H:] act on the encoder features.  The hidden-side matmul is
    # computed once per batch row and broadcast over S (instead of feeding S
    # identical rows through the MXU).
    attn1_w = attn1_w_ref[...]                                     # (H + E2, H)
    a1_enc = jnp.dot(enc2, attn1_w[H:, :],
                     preferred_element_type=jnp.float32)           # (BT*S, H)
    a1_hid = jnp.dot(h, attn1_w[:H, :],
                     preferred_element_type=jnp.float32)           # (BT, H)
    a1 = a1_enc.reshape(BT, S, H) + a1_hid[:, None, :] + attn1_b_ref[...]
    a1 = jnp.where(a1 > 0, a1, 0.01 * a1)                          # LeakyReLU(0.01)

    # attn2 as a lane contraction (attn2_w passed as a (1, H) row vector).
    scores = (jnp.sum(a1 * attn2_w_ref[...], axis=-1, keepdims=True)
              + attn2_b_ref[...])                                  # (BT, S, 1)
    m = jnp.max(scores, axis=1, keepdims=True)
    e = jnp.exp(scores - m)
    wts = e / jnp.sum(e, axis=1, keepdims=True)                    # softmax over S
    context = jnp.sum(wts * enc3, axis=1)                          # (BT, E2) == bmm

    # ------------- embedding lookup fused as a one-hot MXU matmul -------------
    tgt = tgt_ref[...]                                             # (BT, 1) int32
    note_iota = jax.lax.broadcasted_iota(jnp.int32, (BT, NUM_NOTES), 1)
    onehot = (tgt == note_iota).astype(jnp.float32)                # (BT, NUM_NOTES)
    emb = jnp.dot(onehot, emb_tbl_ref[...],
                  preferred_element_type=jnp.float32)              # (BT, EMB)

    # ------------- combine_fc + ReLU (concat-free) -------------
    comb_w = comb_w_ref[...]                                       # (EMB + E2, H)
    x = (jnp.dot(emb, comb_w[:EMB, :], preferred_element_type=jnp.float32)
         + jnp.dot(context, comb_w[EMB:, :], preferred_element_type=jnp.float32)
         + comb_b_ref[...])
    x = jnp.maximum(x, 0.0)
    # TODO(synk): dropout omitted (inference / eval-mode semantics).

    # ------------- single-step LSTM (PyTorch gate order: i, f, g, o) -------------
    gates = (jnp.dot(x, w_ih_ref[...], preferred_element_type=jnp.float32)
             + jnp.dot(h, w_hh_ref[...], preferred_element_type=jnp.float32)
             + b_lstm_ref[...])                                    # (BT, 4H)
    i_g = jax.nn.sigmoid(gates[:, 0:H])
    f_g = jax.nn.sigmoid(gates[:, H:2 * H])
    g_g = jnp.tanh(gates[:, 2 * H:3 * H])
    o_g = jax.nn.sigmoid(gates[:, 3 * H:4 * H])
    c_new = f_g * c + i_g * g_g
    h_new = o_g * jnp.tanh(c_new)

    # ------------- output projection (lane-dense: NUM_NOTES padded to 128) -------------
    logits_ref[...] = (jnp.dot(h_new, out_w_ref[...],
                               preferred_element_type=jnp.float32)
                       + out_b_ref[...])
    h_out_ref[...] = h_new
    c_out_ref[...] = c_new


@functools.partial(jax.jit, static_argnames=("b_tile",))
def rnn_decoder_forward(tgt, encode_output, params, memory=None, b_tile=None):
    """tgt: (B, 1) int32, encode_output: (B, S, 2*ENC_H) float32.

    memory (optional): tuple (h, c), each (B, 1, DEC_H).
    Returns (logits (B, 1, NUM_NOTES), (h, c) each (B, 1, DEC_H)).
    """
    B, S, E2 = encode_output.shape
    H = params["w_hh"].shape[0]
    NUM_NOTES = params["out_w"].shape[1]
    N_PAD = _round_up(NUM_NOTES, 128)

    if b_tile is None:
        # One (8-sublane) tile minimum; grow toward 128 so matmul M fills the MXU.
        # TODO(synk): when scaling S/E2 up, budget (b_tile, S, E2) double-buffered
        # blocks against v7x's 64 MiB VMEM (set vmem_limit_bytes if needed).
        b_tile = min(128, _round_up(B, 8))
    B_pad = _round_up(B, b_tile)
    grid = B_pad // b_tile

    def pad_batch(x):
        if x.shape[0] == B_pad:
            return x
        return jnp.pad(x, [(0, B_pad - x.shape[0])] + [(0, 0)] * (x.ndim - 1))

    enc_p = pad_batch(encode_output.astype(jnp.float32))           # (B_pad, S, E2)
    tgt_p = pad_batch(tgt.astype(jnp.int32).reshape(B, 1))         # (B_pad, 1)

    if memory is None:
        h0 = jnp.zeros((B_pad, H), jnp.float32)
        c0 = jnp.zeros((B_pad, H), jnp.float32)
    else:
        h0 = pad_batch(memory[0].reshape(B, H))
        c0 = pad_batch(memory[1].reshape(B, H))

    # Lane-dense output projection: pad NUM_NOTES -> multiple of 128.
    out_w_p = jnp.pad(params["out_w"], ((0, 0), (0, N_PAD - NUM_NOTES)))
    out_b_p = jnp.pad(params["out_b"], ((0, 0), (0, N_PAD - NUM_NOTES)))
    attn2_row = params["attn2_w"].reshape(1, H)                    # (H, 1) -> (1, H)

    batched2 = lambda d: pl.BlockSpec((b_tile, d), lambda b: (b, 0))
    full = lambda a: pl.BlockSpec(a.shape, lambda b: (0,) * a.ndim)

    weights = [params["embedding"], params["attn1_w"], params["attn1_b"],
               attn2_row, params["attn2_b"], params["comb_w"], params["comb_b"],
               params["w_ih"], params["w_hh"], params["b_lstm"],
               out_w_p, out_b_p]

    in_specs = ([pl.BlockSpec((b_tile, S, E2), lambda b: (b, 0, 0)),
                 batched2(1), batched2(H), batched2(H)]
                + [full(w) for w in weights])

    out_shape = (jax.ShapeDtypeStruct((B_pad, N_PAD), jnp.float32),
                 jax.ShapeDtypeStruct((B_pad, H), jnp.float32),
                 jax.ShapeDtypeStruct((B_pad, H), jnp.float32))
    out_specs = (batched2(N_PAD), batched2(H), batched2(H))

    logits_p, h_new, c_new = pl.pallas_call(
        rnn_decoder_kernel,
        out_shape=out_shape,
        grid_spec=pltpu.PrefetchScalarGridSpec(
            num_scalar_prefetch=0,
            grid=(grid,),
            in_specs=in_specs,
            out_specs=out_specs,
        ),
        # Recurrent state written back in place across decode steps.
        input_output_aliases={2: 1, 3: 2},
        compiler_params=pltpu.CompilerParams(
            dimension_semantics=("parallel",)),
    )(enc_p, tgt_p, h0, c0, *weights)

    logits = logits_p[:B, :NUM_NOTES].reshape(B, 1, NUM_NOTES)
    h_out = h_new[:B].reshape(B, 1, H)
    c_out = c_new[:B].reshape(B, 1, H)
    return logits, (h_out, c_out)


def rnn_decoder_reference(tgt, enc, params, h0, c0):
    """Pure-JAX reference replicating the PyTorch forward (eval mode)."""
    B, S, E2 = enc.shape
    H = params["w_hh"].shape[0]
    hid_rep = jnp.broadcast_to(h0, (B, S, H))
    concat = jnp.concatenate([hid_rep, enc], axis=-1)              # [hidden, enc]
    a1 = concat @ params["attn1_w"] + params["attn1_b"]
    a1 = jnp.where(a1 > 0, a1, 0.01 * a1)
    a2 = a1 @ params["attn2_w"] + params["attn2_b"]                # (B, S, 1)
    wts = jax.nn.softmax(a2, axis=1)
    context = jnp.sum(wts * enc, axis=1, keepdims=True)            # (B, 1, E2)
    emb = params["embedding"][tgt]                                 # (B, 1, EMB)
    x = jnp.concatenate([emb, context], axis=-1) @ params["comb_w"] + params["comb_b"]
    x = jax.nn.relu(x)
    gates = x @ params["w_ih"] + h0 @ params["w_hh"] + params["b_lstm"]
    i = jax.nn.sigmoid(gates[..., :H])
    f = jax.nn.sigmoid(gates[..., H:2 * H])
    g = jnp.tanh(gates[..., 2 * H:3 * H])
    o = jax.nn.sigmoid(gates[..., 3 * H:4 * H])
    c = f * c0 + i * g
    h = o * jnp.tanh(c)
    logits = h @ params["out_w"] + params["out_b"]
    return logits, h, c


if __name__ == "__main__":
    # Small shapes; E2 != DEC_H on purpose to validate the [hidden, enc] /
    # [emb, context] weight-row ordering, and B not a multiple of the tile to
    # exercise batch padding.
    B, S = 3, 8
    NUM_NOTES = 40
    EMBED = 16
    ENC_H = 24          # encode_hidden_dim -> encode_output feature = 2*ENC_H = 48
    DEC_H = 32          # decode_hidden_dim
    E2 = 2 * ENC_H

    key = jax.random.PRNGKey(0)
    keys = jax.random.split(key, 16)

    def init(k, shape, scale=0.1):
        return scale * jax.random.normal(k, shape, jnp.float32)

    params = {
        # Attention (attn1 rows ordered [hidden ; enc])
        "attn1_w": init(keys[0], (DEC_H + E2, DEC_H)),
        "attn1_b": init(keys[1], (1, DEC_H)),
        "attn2_w": init(keys[2], (DEC_H, 1)),
        "attn2_b": init(keys[3], (1, 1)),
        # Embedding
        "embedding": init(keys[4], (NUM_NOTES, EMBED)),
        # combine_fc (rows ordered [embedding ; context])
        "comb_w": init(keys[5], (EMBED + E2, DEC_H)),
        "comb_b": init(keys[6], (1, DEC_H)),
        # LSTM (i, f, g, o gate order; biases pre-summed)
        "w_ih": init(keys[7], (DEC_H, 4 * DEC_H)),
        "w_hh": init(keys[8], (DEC_H, 4 * DEC_H)),
        "b_lstm": init(keys[9], (1, 4 * DEC_H)),
        # notes_output
        "out_w": init(keys[10], (DEC_H, NUM_NOTES)),
        "out_b": init(keys[11], (1, NUM_NOTES)),
    }

    tgt = jax.random.randint(keys[12], (B, 1), 0, NUM_NOTES, jnp.int32)
    encode_output = jax.random.normal(keys[13], (B, S, E2), jnp.float32)

    logits, (h_new, c_new) = rnn_decoder_forward(tgt, encode_output, params)
    jax.block_until_ready((logits, h_new, c_new))

    # Verify against pure-JAX reference.
    h0 = jnp.zeros((B, 1, DEC_H), jnp.float32)
    c0 = jnp.zeros((B, 1, DEC_H), jnp.float32)
    ref_logits, ref_h, ref_c = rnn_decoder_reference(tgt, encode_output, params, h0, c0)
    assert jnp.allclose(logits, ref_logits, atol=1e-4, rtol=1e-4)
    assert jnp.allclose(h_new, ref_h, atol=1e-4, rtol=1e-4)
    assert jnp.allclose(c_new, ref_c, atol=1e-4, rtol=1e-4)

    print("KERNEL_OK")
</pallas_src>

<mosaic_0001>
module attributes {stable_mosaic.version = 11 : i64} {
  func.func @rnn_decoder_kernel(%arg0: i32, %arg1: memref<8x8x48xf32, #tpu.memory_space<vmem>>, %arg2: memref<8x1xi32, #tpu.memory_space<vmem>>, %arg3: memref<8x32xf32, #tpu.memory_space<vmem>>, %arg4: memref<8x32xf32, #tpu.memory_space<vmem>>, %arg5: memref<40x16xf32, #tpu.memory_space<vmem>>, %arg6: memref<80x32xf32, #tpu.memory_space<vmem>>, %arg7: memref<1x32xf32, #tpu.memory_space<vmem>>, %arg8: memref<1x32xf32, #tpu.memory_space<vmem>>, %arg9: memref<1x1xf32, #tpu.memory_space<vmem>>, %arg10: memref<64x32xf32, #tpu.memory_space<vmem>>, %arg11: memref<1x32xf32, #tpu.memory_space<vmem>>, %arg12: memref<32x128xf32, #tpu.memory_space<vmem>>, %arg13: memref<32x128xf32, #tpu.memory_space<vmem>>, %arg14: memref<1x128xf32, #tpu.memory_space<vmem>>, %arg15: memref<32x128xf32, #tpu.memory_space<vmem>>, %arg16: memref<1x128xf32, #tpu.memory_space<vmem>>, %arg17: memref<8x128xf32, #tpu.memory_space<vmem>>, %arg18: memref<8x32xf32, #tpu.memory_space<vmem>>, %arg19: memref<8x32xf32, #tpu.memory_space<vmem>>) attributes {dimension_semantics = [#tpu.dimension_semantics<parallel>], iteration_bounds = array<i64: 1>, scalar_prefetch = 0 : i64, scratch_operands = 0 : i64, tpu.core_type = #tpu.core_type<tc>, window_params = [{transform_indices = @transform_0, window_bounds = array<i64: 8, 8, 48>}, {transform_indices = @transform_1, window_bounds = array<i64: 8, 1>}, {transform_indices = @transform_2, window_bounds = array<i64: 8, 32>}, {transform_indices = @transform_3, window_bounds = array<i64: 8, 32>}, {pipeline_mode = #tpu.pipeline_mode<synchronous>, transform_indices = @transform_4, window_bounds = array<i64: 40, 16>}, {pipeline_mode = #tpu.pipeline_mode<synchronous>, transform_indices = @transform_5, window_bounds = array<i64: 80, 32>}, {pipeline_mode = #tpu.pipeline_mode<synchronous>, transform_indices = @transform_6, window_bounds = array<i64: 1, 32>}, {pipeline_mode = #tpu.pipeline_mode<synchronous>, transform_indices = @transform_7, window_bounds = array<i64: 1, 32>}, {pipeline_mode = #tpu.pipeline_mode<synchronous>, transform_indices = @transform_8, window_bounds = array<i64: 1, 1>}, {pipeline_mode = #tpu.pipeline_mode<synchronous>, transform_indices = @transform_9, window_bounds = array<i64: 64, 32>}, {pipeline_mode = #tpu.pipeline_mode<synchronous>, transform_indices = @transform_10, window_bounds = array<i64: 1, 32>}, {pipeline_mode = #tpu.pipeline_mode<synchronous>, transform_indices = @transform_11, window_bounds = array<i64: 32, 128>}, {pipeline_mode = #tpu.pipeline_mode<synchronous>, transform_indices = @transform_12, window_bounds = array<i64: 32, 128>}, {pipeline_mode = #tpu.pipeline_mode<synchronous>, transform_indices = @transform_13, window_bounds = array<i64: 1, 128>}, {pipeline_mode = #tpu.pipeline_mode<synchronous>, transform_indices = @transform_14, window_bounds = array<i64: 32, 128>}, {pipeline_mode = #tpu.pipeline_mode<synchronous>, transform_indices = @transform_15, window_bounds = array<i64: 1, 128>}, {transform_indices = @transform_16, window_bounds = array<i64: 8, 128>}, {transform_indices = @transform_17, window_bounds = array<i64: 8, 32>}, {transform_indices = @transform_18, window_bounds = array<i64: 8, 32>}]} {
    %c0 = arith.constant 0 : index
    %c0_0 = arith.constant 0 : index
    %c0_1 = arith.constant 0 : index
    %0 = vector.load %arg1[%c0, %c0_0, %c0_1] : memref<8x8x48xf32, #tpu.memory_space<vmem>>, vector<8x8x48xf32>
    %1 = vector.shape_cast %0 : vector<8x8x48xf32> to vector<64x48xf32>
    %c0_2 = arith.constant 0 : index
    %c0_3 = arith.constant 0 : index
    %2 = vector.load %arg3[%c0_2, %c0_3] : memref<8x32xf32, #tpu.memory_space<vmem>>, vector<8x32xf32>
    %c0_4 = arith.constant 0 : index
    %c0_5 = arith.constant 0 : index
    %3 = vector.load %arg4[%c0_4, %c0_5] : memref<8x32xf32, #tpu.memory_space<vmem>>, vector<8x32xf32>
    %c0_6 = arith.constant 0 : index
    %c0_7 = arith.constant 0 : index
    %4 = vector.load %arg6[%c0_6, %c0_7] : memref<80x32xf32, #tpu.memory_space<vmem>>, vector<80x32xf32>
    %5 = vector.extract_strided_slice %4 {offsets = [32, 0], sizes = [48, 32], strides = [1, 1]} : vector<80x32xf32> to vector<48x32xf32>
    %cst = arith.constant dense<0.000000e+00> : vector<64x32xf32>
    %6 = tpu.matmul %1, %5, %cst {dimension_numbers = #tpu.dot_dimension_numbers<[1], [0], [0], [1], [0, 0, 1, 1], [], []>} : vector<64x48xf32>, vector<48x32xf32>, vector<64x32xf32> -> vector<64x32xf32>
    %7 = vector.extract_strided_slice %4 {offsets = [0, 0], sizes = [32, 32], strides = [1, 1]} : vector<80x32xf32> to vector<32x32xf32>
    %cst_8 = arith.constant dense<0.000000e+00> : vector<8x32xf32>
    %8 = tpu.matmul %2, %7, %cst_8 {dimension_numbers = #tpu.dot_dimension_numbers<[1], [0], [0], [1], [0, 0, 1, 1], [], []>} : vector<8x32xf32>, vector<32x32xf32>, vector<8x32xf32> -> vector<8x32xf32>
    %9 = vector.shape_cast %6 : vector<64x32xf32> to vector<8x8x32xf32>
    %10 = vector.shape_cast %8 : vector<8x32xf32> to vector<8x1x32xf32>
    %11 = vector.broadcast %10 : vector<8x1x32xf32> to vector<8x8x32xf32>
    %12 = arith.addf %9, %11 : vector<8x8x32xf32>
    %c0_9 = arith.constant 0 : index
    %c0_10 = arith.constant 0 : index
    %13 = vector.load %arg7[%c0_9, %c0_10] : memref<1x32xf32, #tpu.memory_space<vmem>>, vector<1x32xf32>
    %14 = vector.shape_cast %13 : vector<1x32xf32> to vector<1x1x32xf32>
    %15 = vector.broadcast %14 : vector<1x1x32xf32> to vector<8x8x32xf32>
    %16 = arith.addf %12, %15 : vector<8x8x32xf32>
    %cst_11 = arith.constant 0.000000e+00 : f32
    %17 = vector.broadcast %cst_11 : f32 to vector<8x8x32xf32>
    %18 = arith.cmpf ogt, %16, %17 : vector<8x8x32xf32>
    %cst_12 = arith.constant 0.00999999977 : f32
    %19 = vector.broadcast %cst_12 : f32 to vector<8x8x32xf32>
    %20 = arith.mulf %19, %16 : vector<8x8x32xf32>
    %21 = arith.select %18, %16, %20 : vector<8x8x32xi1>, vector<8x8x32xf32>
    %c0_13 = arith.constant 0 : index
    %c0_14 = arith.constant 0 : index
    %22 = vector.load %arg8[%c0_13, %c0_14] : memref<1x32xf32, #tpu.memory_space<vmem>>, vector<1x32xf32>
    %23 = vector.shape_cast %22 : vector<1x32xf32> to vector<1x1x32xf32>
    %24 = vector.broadcast %23 : vector<1x1x32xf32> to vector<8x8x32xf32>
    %25 = arith.mulf %21, %24 : vector<8x8x32xf32>
    %cst_15 = arith.constant dense<0.000000e+00> : vector<8x8xf32>
    %26 = vector.multi_reduction <add>, %25, %cst_15 [2] : vector<8x8x32xf32> to vector<8x8xf32>
    %27 = vector.shape_cast %26 : vector<8x8xf32> to vector<8x8x1xf32>
    %c0_16 = arith.constant 0 : index
    %c0_17 = arith.constant 0 : index
    %28 = vector.load %arg9[%c0_16, %c0_17] : memref<1x1xf32, #tpu.memory_space<vmem>>, vector<1x1xf32>
    %29 = vector.shape_cast %28 : vector<1x1xf32> to vector<1x1x1xf32>
    %30 = vector.broadcast %29 : vector<1x1x1xf32> to vector<8x8x1xf32>
    %31 = arith.addf %27, %30 : vector<8x8x1xf32>
    %cst_18 = arith.constant dense<0xFF800000> : vector<8x1xf32>
    %32 = vector.multi_reduction <maximumf>, %31, %cst_18 [1] : vector<8x8x1xf32> to vector<8x1xf32>
    %33 = vector.shape_cast %32 : vector<8x1xf32> to vector<8x1x1xf32>
    %34 = vector.broadcast %33 : vector<8x1x1xf32> to vector<8x8x1xf32>
    %35 = arith.subf %31, %34 : vector<8x8x1xf32>
    %36 = math.exp %35 : vector<8x8x1xf32>
    %cst_19 = arith.constant dense<0.000000e+00> : vector<8x1xf32>
    %37 = vector.multi_reduction <add>, %36, %cst_19 [1] : vector<8x8x1xf32> to vector<8x1xf32>
    %38 = vector.shape_cast %37 : vector<8x1xf32> to vector<8x1x1xf32>
    %39 = vector.broadcast %38 : vector<8x1x1xf32> to vector<8x8x1xf32>
    %40 = arith.divf %36, %39 : vector<8x8x1xf32>
    %41 = vector.broadcast %40 : vector<8x8x1xf32> to vector<8x8x48xf32>
    %42 = arith.mulf %41, %0 : vector<8x8x48xf32>
    %cst_20 = arith.constant dense<0.000000e+00> : vector<8x48xf32>
    %43 = vector.multi_reduction <add>, %42, %cst_20 [1] : vector<8x8x48xf32> to vector<8x48xf32>
    %c0_21 = arith.constant 0 : index
    %c0_22 = arith.constant 0 : index
    %44 = vector.load %arg2[%c0_21, %c0_22] : memref<8x1xi32, #tpu.memory_space<vmem>>, vector<8x1xi32>
    %45 = tpu.iota {dimensions = array<i32: 1>} : vector<8x40xi32>
    %46 = vector.broadcast %44 : vector<8x1xi32> to vector<8x40xi32>
    %47 = arith.cmpi eq, %46, %45 : vector<8x40xi32>
    %48 = arith.extui %47 : vector<8x40xi1> to vector<8x40xi32>
    %49 = arith.sitofp %48 : vector<8x40xi32> to vector<8x40xf32>
    %c0_23 = arith.constant 0 : index
    %c0_24 = arith.constant 0 : index
    %50 = vector.load %arg5[%c0_23, %c0_24] : memref<40x16xf32, #tpu.memory_space<vmem>>, vector<40x16xf32>
    %cst_25 = arith.constant dense<0.000000e+00> : vector<8x16xf32>
    %51 = tpu.matmul %49, %50, %cst_25 {dimension_numbers = #tpu.dot_dimension_numbers<[1], [0], [0], [1], [0, 0, 1, 1], [], []>} : vector<8x40xf32>, vector<40x16xf32>, vector<8x16xf32> -> vector<8x16xf32>
    %c0_26 = arith.constant 0 : index
    %c0_27 = arith.constant 0 : index
    %52 = vector.load %arg10[%c0_26, %c0_27] : memref<64x32xf32, #tpu.memory_space<vmem>>, vector<64x32xf32>
    %53 = vector.extract_strided_slice %52 {offsets = [0, 0], sizes = [16, 32], strides = [1, 1]} : vector<64x32xf32> to vector<16x32xf32>
    %cst_28 = arith.constant dense<0.000000e+00> : vector<8x32xf32>
    %54 = tpu.matmul %51, %53, %cst_28 {dimension_numbers = #tpu.dot_dimension_numbers<[1], [0], [0], [1], [0, 0, 1, 1], [], []>} : vector<8x16xf32>, vector<16x32xf32>, vector<8x32xf32> -> vector<8x32xf32>
    %55 = vector.extract_strided_slice %52 {offsets = [16, 0], sizes = [48, 32], strides = [1, 1]} : vector<64x32xf32> to vector<48x32xf32>
    %cst_29 = arith.constant dense<0.000000e+00> : vector<8x32xf32>
    %56 = tpu.matmul %43, %55, %cst_29 {dimension_numbers = #tpu.dot_dimension_numbers<[1], [0], [0], [1], [0, 0, 1, 1], [], []>} : vector<8x48xf32>, vector<48x32xf32>, vector<8x32xf32> -> vector<8x32xf32>
    %57 = arith.addf %54, %56 : vector<8x32xf32>
    %c0_30 = arith.constant 0 : index
    %c0_31 = arith.constant 0 : index
    %58 = vector.load %arg11[%c0_30, %c0_31] : memref<1x32xf32, #tpu.memory_space<vmem>>, vector<1x32xf32>
    %59 = vector.broadcast %58 : vector<1x32xf32> to vector<8x32xf32>
    %60 = arith.addf %57, %59 : vector<8x32xf32>
    %cst_32 = arith.constant 0.000000e+00 : f32
    %61 = vector.broadcast %cst_32 : f32 to vector<8x32xf32>
    %62 = arith.maximumf %60, %61 : vector<8x32xf32>
    %c0_33 = arith.constant 0 : index
    %c0_34 = arith.constant 0 : index
    %63 = vector.load %arg12[%c0_33, %c0_34] : memref<32x128xf32, #tpu.memory_space<vmem>>, vector<32x128xf32>
    %cst_35 = arith.constant dense<0.000000e+00> : vector<8x128xf32>
    %64 = tpu.matmul %62, %63, %cst_35 {dimension_numbers = #tpu.dot_dimension_numbers<[1], [0], [0], [1], [0, 0, 1, 1], [], []>} : vector<8x32xf32>, vector<32x128xf32>, vector<8x128xf32> -> vector<8x128xf32>
    %c0_36 = arith.constant 0 : index
    %c0_37 = arith.constant 0 : index
    %65 = vector.load %arg13[%c0_36, %c0_37] : memref<32x128xf32, #tpu.memory_space<vmem>>, vector<32x128xf32>
    %cst_38 = arith.constant dense<0.000000e+00> : vector<8x128xf32>
    %66 = tpu.matmul %2, %65, %cst_38 {dimension_numbers = #tpu.dot_dimension_numbers<[1], [0], [0], [1], [0, 0, 1, 1], [], []>} : vector<8x32xf32>, vector<32x128xf32>, vector<8x128xf32> -> vector<8x128xf32>
    %67 = arith.addf %64, %66 : vector<8x128xf32>
    %c0_39 = arith.constant 0 : index
    %c0_40 = arith.constant 0 : index
    %68 = vector.load %arg14[%c0_39, %c0_40] : memref<1x128xf32, #tpu.memory_space<vmem>>, vector<1x128xf32>
    %69 = vector.broadcast %68 : vector<1x128xf32> to vector<8x128xf32>
    %70 = arith.addf %67, %69 : vector<8x128xf32>
    %71 = vector.extract_strided_slice %70 {offsets = [0, 0], sizes = [8, 32], strides = [1, 1]} : vector<8x128xf32> to vector<8x32xf32>
    %72 = arith.negf %71 : vector<8x32xf32>
    %73 = math.exp %72 : vector<8x32xf32>
    %cst_41 = arith.constant 1.000000e+00 : f32
    %74 = vector.broadcast %cst_41 : f32 to vector<8x32xf32>
    %75 = arith.addf %74, %73 : vector<8x32xf32>
    %76 = arith.divf %74, %75 : vector<8x32xf32>
    %77 = vector.extract_strided_slice %70 {offsets = [0, 32], sizes = [8, 32], strides = [1, 1]} : vector<8x128xf32> to vector<8x32xf32>
    %78 = arith.negf %77 : vector<8x32xf32>
    %79 = math.exp %78 : vector<8x32xf32>
    %cst_42 = arith.constant 1.000000e+00 : f32
    %80 = vector.broadcast %cst_42 : f32 to vector<8x32xf32>
    %81 = arith.addf %80, %79 : vector<8x32xf32>
    %82 = arith.divf %80, %81 : vector<8x32xf32>
    %83 = vector.extract_strided_slice %70 {offsets = [0, 64], sizes = [8, 32], strides = [1, 1]} : vector<8x128xf32> to vector<8x32xf32>
    %84 = math.tanh %83 : vector<8x32xf32>
    %85 = vector.extract_strided_slice %70 {offsets = [0, 96], sizes = [8, 32], strides = [1, 1]} : vector<8x128xf32> to vector<8x32xf32>
    %86 = arith.negf %85 : vector<8x32xf32>
    %87 = math.exp %86 : vector<8x32xf32>
    %cst_43 = arith.constant 1.000000e+00 : f32
    %88 = vector.broadcast %cst_43 : f32 to vector<8x32xf32>
    %89 = arith.addf %88, %87 : vector<8x32xf32>
    %90 = arith.divf %88, %89 : vector<8x32xf32>
    %91 = arith.mulf %82, %3 : vector<8x32xf32>
    %92 = arith.mulf %76, %84 : vector<8x32xf32>
    %93 = arith.addf %91, %92 : vector<8x32xf32>
    %94 = math.tanh %93 : vector<8x32xf32>
    %95 = arith.mulf %90, %94 : vector<8x32xf32>
    %c0_44 = arith.constant 0 : index
    %c0_45 = arith.constant 0 : index
    %96 = vector.load %arg15[%c0_44, %c0_45] : memref<32x128xf32, #tpu.memory_space<vmem>>, vector<32x128xf32>
    %cst_46 = arith.constant dense<0.000000e+00> : vector<8x128xf32>
    %97 = tpu.matmul %95, %96, %cst_46 {dimension_numbers = #tpu.dot_dimension_numbers<[1], [0], [0], [1], [0, 0, 1, 1], [], []>} : vector<8x32xf32>, vector<32x128xf32>, vector<8x128xf32> -> vector<8x128xf32>
    %c0_47 = arith.constant 0 : index
    %c0_48 = arith.constant 0 : index
    %98 = vector.load %arg16[%c0_47, %c0_48] : memref<1x128xf32, #tpu.memory_space<vmem>>, vector<1x128xf32>
    %99 = vector.broadcast %98 : vector<1x128xf32> to vector<8x128xf32>
    %100 = arith.addf %97, %99 : vector<8x128xf32>
    %c0_49 = arith.constant 0 : index
    %c0_50 = arith.constant 0 : index
    %101 = vector.load %arg17[%c0_49, %c0_50] : memref<8x128xf32, #tpu.memory_space<vmem>>, vector<8x128xf32>
    tpu.vector_store %arg17[%c0_49, %c0_50], %100 {strides = array<i32>} : memref<8x128xf32, #tpu.memory_space<vmem>>, vector<8x128xf32>,
    %c0_51 = arith.constant 0 : index
    %c0_52 = arith.constant 0 : index
    %102 = vector.load %arg18[%c0_51, %c0_52] : memref<8x32xf32, #tpu.memory_space<vmem>>, vector<8x32xf32>
    tpu.vector_store %arg18[%c0_51, %c0_52], %95 {strides = array<i32>} : memref<8x32xf32, #tpu.memory_space<vmem>>, vector<8x32xf32>,
    %c0_53 = arith.constant 0 : index
    %c0_54 = arith.constant 0 : index
    %103 = vector.load %arg19[%c0_53, %c0_54] : memref<8x32xf32, #tpu.memory_space<vmem>>, vector<8x32xf32>
    tpu.vector_store %arg19[%c0_53, %c0_54], %93 {strides = array<i32>} : memref<8x32xf32, #tpu.memory_space<vmem>>, vector<8x32xf32>,
    return
  }
  func.func @transform_0(%arg0: i32) -> (i32, i32, i32) {
    %c0_i32 = arith.constant 0 : i32
    %c0_i32_0 = arith.constant 0 : i32
    %c0_i32_1 = arith.constant 0 : i32
    return %arg0, %c0_i32, %c0_i32_0 : i32, i32, i32
  }
  func.func @transform_1(%arg0: i32) -> (i32, i32) {
    %c0_i32 = arith.constant 0 : i32
    %c0_i32_0 = arith.constant 0 : i32
    return %arg0, %c0_i32 : i32, i32
  }
  func.func @transform_2(%arg0: i32) -> (i32, i32) {
    %c0_i32 = arith.constant 0 : i32
    %c0_i32_0 = arith.constant 0 : i32
    return %arg0, %c0_i32 : i32, i32
  }
  func.func @transform_3(%arg0: i32) -> (i32, i32) {
    %c0_i32 = arith.constant 0 : i32
    %c0_i32_0 = arith.constant 0 : i32
    return %arg0, %c0_i32 : i32, i32
  }
  func.func @transform_4(%arg0: i32) -> (i32, i32) {
    %c0_i32 = arith.constant 0 : i32
    %c0_i32_0 = arith.constant 0 : i32
    %c0_i32_1 = arith.constant 0 : i32
    return %c0_i32, %c0_i32_0 : i32, i32
  }
  func.func @transform_5(%arg0: i32) -> (i32, i32) {
    %c0_i32 = arith.constant 0 : i32
    %c0_i32_0 = arith.constant 0 : i32
    %c0_i32_1 = arith.constant 0 : i32
    return %c0_i32, %c0_i32_0 : i32, i32
  }
  func.func @transform_6(%arg0: i32) -> (i32, i32) {
    %c0_i32 = arith.constant 0 : i32
    %c0_i32_0 = arith.constant 0 : i32
    %c0_i32_1 = arith.constant 0 : i32
    return %c0_i32, %c0_i32_0 : i32, i32
  }
  func.func @transform_7(%arg0: i32) -> (i32, i32) {
    %c0_i32 = arith.constant 0 : i32
    %c0_i32_0 = arith.constant 0 : i32
    %c0_i32_1 = arith.constant 0 : i32
    return %c0_i32, %c0_i32_0 : i32, i32
  }
  func.func @transform_8(%arg0: i32) -> (i32, i32) {
    %c0_i32 = arith.constant 0 : i32
    %c0_i32_0 = arith.constant 0 : i32
    %c0_i32_1 = arith.constant 0 : i32
    return %c0_i32, %c0_i32_0 : i32, i32
  }
  func.func @transform_9(%arg0: i32) -> (i32, i32) {
    %c0_i32 = arith.constant 0 : i32
    %c0_i32_0 = arith.constant 0 : i32
    %c0_i32_1 = arith.constant 0 : i32
    return %c0_i32, %c0_i32_0 : i32, i32
  }
  func.func @transform_10(%arg0: i32) -> (i32, i32) {
    %c0_i32 = arith.constant 0 : i32
    %c0_i32_0 = arith.constant 0 : i32
    %c0_i32_1 = arith.constant 0 : i32
    return %c0_i32, %c0_i32_0 : i32, i32
  }
  func.func @transform_11(%arg0: i32) -> (i32, i32) {
    %c0_i32 = arith.constant 0 : i32
    %c0_i32_0 = arith.constant 0 : i32
    %c0_i32_1 = arith.constant 0 : i32
    return %c0_i32, %c0_i32_0 : i32, i32
  }
  func.func @transform_12(%arg0: i32) -> (i32, i32) {
    %c0_i32 = arith.constant 0 : i32
    %c0_i32_0 = arith.constant 0 : i32
    %c0_i32_1 = arith.constant 0 : i32
    return %c0_i32, %c0_i32_0 : i32, i32
  }
  func.func @transform_13(%arg0: i32) -> (i32, i32) {
    %c0_i32 = arith.constant 0 : i32
    %c0_i32_0 = arith.constant 0 : i32
    %c0_i32_1 = arith.constant 0 : i32
    return %c0_i32, %c0_i32_0 : i32, i32
  }
  func.func @transform_14(%arg0: i32) -> (i32, i32) {
    %c0_i32 = arith.constant 0 : i32
    %c0_i32_0 = arith.constant 0 : i32
    %c0_i32_1 = arith.constant 0 : i32
    return %c0_i32, %c0_i32_0 : i32, i32
  }
  func.func @transform_15(%arg0: i32) -> (i32, i32) {
    %c0_i32 = arith.constant 0 : i32
    %c0_i32_0 = arith.constant 0 : i32
    %c0_i32_1 = arith.constant 0 : i32
    return %c0_i32, %c0_i32_0 : i32, i32
  }
  func.func @transform_16(%arg0: i32) -> (i32, i32) {
    %c0_i32 = arith.constant 0 : i32
    %c0_i32_0 = arith.constant 0 : i32
    return %arg0, %c0_i32 : i32, i32
  }
  func.func @transform_17(%arg0: i32) -> (i32, i32) {
    %c0_i32 = arith.constant 0 : i32
    %c0_i32_0 = arith.constant 0 : i32
    return %arg0, %c0_i32 : i32, i32
  }
  func.func @transform_18(%arg0: i32) -> (i32, i32) {
    %c0_i32 = arith.constant 0 : i32
    %c0_i32_0 = arith.constant 0 : i32
    return %arg0, %c0_i32 : i32, i32
  }
}

</mosaic_0001>

<llo_original>
// kernel: rnn_decoder_forward.1
$region0: #{rnn_decoder_forward.1}
  #allocation0 [shape = 'u32[]', space=smem, size = 0x4, offset = 0x4, fixed_abs, tag = 'smem constant byte address 0x4 - core index']
  #allocation1 [shape = 'u32[144,128]{1,0:T(1,128)}', space=vmem, size = 0x12000, scoped, tag = 'internal scratch']
  #allocation2 [shape = 'f32[1,1]{1,0:T(1,128)S(1)}', space=vmem, size = 0x200, scoped, tag = 'scoped memory for rnn_decoder_forward.1']
  %s0 = inlined_call_operand.vmem [shape: f32[8,8,48], index: 0, kind: input, shape index: {}]
  %s1 = inlined_call_operand.vmem [shape: s32[8,1], index: 1, kind: input, shape index: {}]
  %s2 = inlined_call_operand.vmem [shape: f32[8,32], index: 2, kind: input, shape index: {}, may-alias: {2,17}]
  %s3 = inlined_call_operand.vmem [shape: f32[8,32], index: 3, kind: input, shape index: {}, may-alias: {3,18}]
  %s4 = inlined_call_operand.vmem [shape: f32[40,16], index: 4, kind: input, shape index: {}]
  %s5 = inlined_call_operand.vmem [shape: f32[80,32], index: 5, kind: input, shape index: {}]
  %s6 = inlined_call_operand.vmem [shape: f32[1,32], index: 6, kind: input, shape index: {}]
  %s7 = inlined_call_operand.vmem [shape: f32[1,32], index: 7, kind: input, shape index: {}]
  %s8 = inlined_call_operand.<no memory space> [shape: f32[1,1], index: 8, kind: input, shape index: {}]
  %s9 = inlined_call_operand.vmem [shape: f32[64,32], index: 9, kind: input, shape index: {}]
  %s10 = inlined_call_operand.vmem [shape: f32[1,32], index: 10, kind: input, shape index: {}]
  %s11 = inlined_call_operand.vmem [shape: f32[32,128], index: 11, kind: input, shape index: {}]
  %s12 = inlined_call_operand.vmem [shape: f32[32,128], index: 12, kind: input, shape index: {}]
  %s13 = inlined_call_operand.vmem [shape: f32[1,128], index: 13, kind: input, shape index: {}]
  %s14 = inlined_call_operand.vmem [shape: f32[32,128], index: 14, kind: input, shape index: {}]
  %s15 = inlined_call_operand.vmem [shape: f32[1,128], index: 15, kind: input, shape index: {}]
  %s16 = inlined_call_operand.vmem [shape: f32[8,128], index: 16, kind: output, shape index: {0}]
  %s17 = inlined_call_operand.vmem [shape: f32[8,32], index: 17, kind: output, shape index: {1}, may-alias: {2,17}]
  %s18 = inlined_call_operand.vmem [shape: f32[8,32], index: 18, kind: output, shape index: {2}, may-alias: {3,18}]
  %19 = xla_tuple %s16, %s17, %s18
  %s20 = sld [smem:[#allocation0]]
  $region90: #{rnn_decoder_forward.1} parent=0
    _
  %s22 = ssub.s32 1, %s20
  %s23 = scalar_select 0, %s22, %s20
  %v24 = vstv %s8
  %25 = vst [vmem:[#allocation2] sm:$0x1] %v24
  // Predicated region
  $region2: #{rnn_decoder_forward.1} parent=0 // pred_check
    _
  $region3: #{rnn_decoder_forward.1} parent=0 // pred_check_branch
    %27 = sbr.rel (0) target = $region5
  $region4: #{rnn_decoder_forward.1} parent=0 // pred_region
    _
  $region5: #{rnn_decoder_forward.1} parent=0 // pred_fallthru
    _
  // Predicated region
  $region6: #{rnn_decoder_forward.1} parent=0 // pred_check
    _
  $region7: #{rnn_decoder_forward.1} parent=0 // pred_check_branch
    %29 = sbr.rel (0) target = $region9
  $region8: #{rnn_decoder_forward.1} parent=0 // pred_region
    _
  $region9: #{rnn_decoder_forward.1} parent=0 // pred_fallthru
    _
  // Predicated region
  $region10: #{rnn_decoder_forward.1} parent=0 // pred_check
    _
  $region11: #{rnn_decoder_forward.1} parent=0 // pred_check_branch
    %31 = sbr.rel (0) target = $region13
  $region12: #{rnn_decoder_forward.1} parent=0 // pred_region
    _
  $region13: #{rnn_decoder_forward.1} parent=0 // pred_fallthru
    _
  // Predicated region
  $region14: #{rnn_decoder_forward.1} parent=0 // pred_check
    _
  $region15: #{rnn_decoder_forward.1} parent=0 // pred_check_branch
    %33 = sbr.rel (0) target = $region17
  $region16: #{rnn_decoder_forward.1} parent=0 // pred_region
    _
  $region17: #{rnn_decoder_forward.1} parent=0 // pred_fallthru
    _
  // Predicated region
  $region18: #{rnn_decoder_forward.1} parent=0 // pred_check
    _
  $region19: #{rnn_decoder_forward.1} parent=0 // pred_check_branch
    %35 = sbr.rel (0) target = $region21
  $region20: #{rnn_decoder_forward.1} parent=0 // pred_region
    _
  $region21: #{rnn_decoder_forward.1} parent=0 // pred_fallthru
    _
  // Predicated region
  $region22: #{rnn_decoder_forward.1} parent=0 // pred_check
    _
  $region23: #{rnn_decoder_forward.1} parent=0 // pred_check_branch
    %37 = sbr.rel (0) target = $region25
  $region24: #{rnn_decoder_forward.1} parent=0 // pred_region
    _
  $region25: #{rnn_decoder_forward.1} parent=0 // pred_fallthru
    _
  // Predicated region
  $region26: #{rnn_decoder_forward.1} parent=0 // pred_check
    _
  $region27: #{rnn_decoder_forward.1} parent=0 // pred_check_branch
    %39 = sbr.rel (0) target = $region29
  $region28: #{rnn_decoder_forward.1} parent=0 // pred_region
    _
  $region29: #{rnn_decoder_forward.1} parent=0 // pred_fallthru
    _
  // Predicated region
  $region30: #{rnn_decoder_forward.1} parent=0 // pred_check
    _
  $region31: #{rnn_decoder_forward.1} parent=0 // pred_check_branch
    %41 = sbr.rel (0) target = $region33
  $region32: #{rnn_decoder_forward.1} parent=0 // pred_region
    _
  $region33: #{rnn_decoder_forward.1} parent=0 // pred_fallthru
    _
  // Predicated region
  $region34: #{rnn_decoder_forward.1} parent=0 // pred_check
    _
  $region35: #{rnn_decoder_forward.1} parent=0 // pred_check_branch
    %43 = sbr.rel (0) target = $region37
  $region36: #{rnn_decoder_forward.1} parent=0 // pred_region
    _
  $region37: #{rnn_decoder_forward.1} parent=0 // pred_fallthru
    _
  // Predicated region
  $region38: #{rnn_decoder_forward.1} parent=0 // pred_check
    _
  $region39: #{rnn_decoder_forward.1} parent=0 // pred_check_branch
    %45 = sbr.rel (0) target = $region41
  $region40: #{rnn_decoder_forward.1} parent=0 // pred_region
    _
  $region41: #{rnn_decoder_forward.1} parent=0 // pred_fallthru
    _
  // Predicated region
  $region42: #{rnn_decoder_forward.1} parent=0 // pred_check
    _
  $region43: #{rnn_decoder_forward.1} parent=0 // pred_check_branch
    %47 = sbr.rel (0) target = $region45
  $region44: #{rnn_decoder_forward.1} parent=0 // pred_region
    _
  $region45: #{rnn_decoder_forward.1} parent=0 // pred_fallthru
    _
  // Predicated region
  $region46: #{rnn_decoder_forward.1} parent=0 // pred_check
    _
  $region47: #{rnn_decoder_forward.1} parent=0 // pred_check_branch
    %49 = sbr.rel (0) target = $region49
  $region48: #{rnn_decoder_forward.1} parent=0 // pred_region
    _
  $region49: #{rnn_decoder_forward.1} parent=0 // pred_fallthru
    _
  // Predicated region
  $region50: #{rnn_decoder_forward.1} parent=0 // pred_check
    _
  $region51: #{rnn_decoder_forward.1} parent=0 // pred_check_branch
    %51 = sbr.rel (0) target = $region53
  $region52: #{rnn_decoder_forward.1} parent=0 // pred_region
    _
  $region53: #{rnn_decoder_forward.1} parent=0 // pred_fallthru
    _
  // Predicated region
  $region54: #{rnn_decoder_forward.1} parent=0 // pred_check
    _
  $region55: #{rnn_decoder_forward.1} parent=0 // pred_check_branch
    %53 = sbr.rel (0) target = $region57
  $region56: #{rnn_decoder_forward.1} parent=0 // pred_region
    _
  $region57: #{rnn_decoder_forward.1} parent=0 // pred_fallthru
    _
  // Predicated region
  $region58: #{rnn_decoder_forward.1} parent=0 // pred_check
    _
  $region59: #{rnn_decoder_forward.1} parent=0 // pred_check_branch
    %55 = sbr.rel (0) target = $region61
  $region60: #{rnn_decoder_forward.1} parent=0 // pred_region
    _
  $region61: #{rnn_decoder_forward.1} parent=0 // pred_fallthru
    _
  // Predicated region
  $region62: #{rnn_decoder_forward.1} parent=0 // pred_check
    _
  $region63: #{rnn_decoder_forward.1} parent=0 // pred_check_branch
    %57 = sbr.rel (0) target = $region65
  $region64: #{rnn_decoder_forward.1} parent=0 // pred_region
    _
  $region65: #{rnn_decoder_forward.1} parent=0 // pred_fallthru
    _
  %v58 = vld [vmem:[%s0] sm:$0xff]
  %v59 = vld [vmem:[%s0 + $0x8] sm:$0xff]
  %v60 = vld [vmem:[%s0 + $0x10] sm:$0xff]
  %v61 = vld [vmem:[%s0 + $0x18] sm:$0xff]
  %v62 = vld [vmem:[%s0 + $0x20] sm:$0xff]
  %v63 = vld [vmem:[%s0 + $0x28] sm:$0xff]
  %v64 = vld [vmem:[%s0 + $0x30] sm:$0xff]
  %v65 = vld [vmem:[%s0 + $0x38] sm:$0xff]
  %v66 = vld [vmem:[%s2] sm:$0xff]
  %v67 = vld [vmem:[%s3] sm:$0xff]
  %v68 = vld [vmem:[%s5] sm:$0xff]
  %v69 = vld [vmem:[%s5 + $0x8] sm:$0xff]
  %v70 = vld [vmem:[%s5 + $0x10] sm:$0xff]
  %v71 = vld [vmem:[%s5 + $0x18] sm:$0xff]
  %v72 = vld [vmem:[%s5 + $0x20] sm:$0xff]
  %v73 = vld [vmem:[%s5 + $0x28] sm:$0xff]
  %v74 = vld [vmem:[%s5 + $0x30] sm:$0xff]
  %v75 = vld [vmem:[%s5 + $0x38] sm:$0xff]
  %v76 = vld [vmem:[%s5 + $0x40] sm:$0xff]
  %v77 = vld [vmem:[%s5 + $0x48] sm:$0xff]
  %vm78 = vcmask 392192
  %v80 = vsel %vm78, %v58, 0
  %v83 = vsel %vm78, %v59, 0
  %v86 = vsel %vm78, %v60, 0
  %v89 = vsel %vm78, %v61, 0
  %v92 = vsel %vm78, %v62, 0
  %v95 = vsel %vm78, %v63, 0
  %v98 = vsel %vm78, %v64, 0
  %v101 = vsel %vm78, %v65, 0
  %103 = vmatprep.subr.mxu0 0.0
  %104 = vmatpush1.msra.mxu0 0.0
  %105 = vmatprep.subr.mxu0 0.0
  %106 = vmatpush1.msra.mxu0 0.0
  %107 = vmatprep.subr.mxu0 0.0
  %108 = vmatpush1.msra.mxu0 0.0
  %109 = vmatprep.subr.mxu0 0.0
  %110 = vmatpush1.msra.mxu0 0.0
  %111 = vmatprep.subr.mxu0 0.0
  %112 = vmatpush1.msra.mxu0 0.0
  %113 = vmatprep.subr.mxu0 0.0
  %114 = vmatpush1.msra.mxu0 0.0
  %115 = vmatprep.subr.mxu0 0.0
  %116 = vmatpush1.msra.mxu0 0.0
  %117 = vmatprep.subr.mxu0 0.0
  %118 = vmatpush1.msra.mxu0 0.0
  %119 = vmatprep.subr.mxu0 0.0
  %120 = vmatpush1.msra.mxu0 0.0
  %121 = vmatprep.subr.mxu0 0.0
  %122 = vmatpush1.msra.mxu0 0.0
  %123 = vmatprep.subr.mxu0 0.0
  %124 = vmatpush1.msra.mxu0 %v77
  %125 = vmatprep.subr.mxu0 0.0
  %126 = vmatpush1.msra.mxu0 %v76
  %127 = vmatprep.subr.mxu0 0.0
  %128 = vmatpush1.msra.mxu0 %v75
  %129 = vmatprep.subr.mxu0 0.0
  %130 = vmatpush1.msra.mxu0 %v74
  %131 = vmatprep.subr.mxu0 0.0
  %132 = vmatpush1.msra.mxu0 %v73
  %133 = vmatprep.subr.mxu0 0.0
  %134 = vmatpush1.msra.mxu0 %v72
  %135 = vmatprep.subr.mxu0 0.0
  %136 = vmatpush2.msra.mxu0 0.0
  %137 = vmatprep.subr.mxu0 0.0
  %138 = vmatpush2.msra.mxu0 0.0
  %139 = vmatprep.subr.mxu0 0.0
  %140 = vmatpush2.msra.mxu0 0.0
  %141 = vmatprep.subr.mxu0 0.0
  %142 = vmatpush2.msra.mxu0 0.0
  %143 = vmatprep.subr.mxu0 0.0
  %144 = vmatpush2.msra.mxu0 0.0
  %145 = vmatprep.subr.mxu0 0.0
  %146 = vmatpush2.msra.mxu0 0.0
  %147 = vmatprep.subr.mxu0 0.0
  %148 = vmatpush2.msra.mxu0 0.0
  %149 = vmatprep.subr.mxu0 0.0
  %150 = vmatpush2.msra.mxu0 0.0
  %151 = vmatprep.subr.mxu0 0.0
  %152 = vmatpush2.msra.mxu0 0.0
  %153 = vmatprep.subr.mxu0 0.0
  %154 = vmatpush2.msra.mxu0 0.0
  %155 = vmatprep.subr.mxu0 0.0
  %156 = vmatpush2.msra.mxu0 0.0
  %157 = vmatprep.subr.mxu0 0.0
  %158 = vmatpush2.msra.mxu0 0.0
  %159 = vmatprep.subr.mxu0 0.0
  %160 = vmatpush2.msra.mxu0 0.0
  %161 = vmatprep.subr.mxu0 0.0
  %162 = vmatpush2.msra.mxu0 0.0
  %163 = vmatprep.subr.mxu0 0.0
  %164 = vmatpush2.msra.mxu0 0.0
  %165 = vmatprep.subr.mxu0 0.0
  %166 = vmatpush2.msra.mxu0 0.0
  %167 = vmatprep.mubr.f32.mxu0 0.0
  %168 = vmatmul.mubr.f32.gmra.mxu0 %v80
  %v169 = vpop.f32.mrf.mxu0
  %v170 = vadd.f32 0.0, %v169
  %v171 = vpop.f32.mrf.mxu0
  %172 = vmatprep.mubr.f32.mxu0 0.0
  %173 = vmatmul.mubr.f32.gmra.mxu0 %v83
  %v174 = vpop.f32.mrf.mxu0
  %v175 = vadd.f32 0.0, %v174
  %v176 = vpop.f32.mrf.mxu0
  %177 = vmatprep.mubr.f32.mxu0 0.0
  %178 = vmatmul.mubr.f32.gmra.mxu0 %v86
  %v179 = vpop.f32.mrf.mxu0
  %v180 = vadd.f32 0.0, %v179
  %v181 = vpop.f32.mrf.mxu0
  %182 = vmatprep.mubr.f32.mxu0 0.0
  %183 = vmatmul.mubr.f32.gmra.mxu0 %v89
  %v184 = vpop.f32.mrf.mxu0
  %v185 = vadd.f32 0.0, %v184
  %v186 = vpop.f32.mrf.mxu0
  %187 = vmatprep.mubr.f32.mxu0 0.0
  %188 = vmatmul.mubr.f32.gmra.mxu0 %v92
  %v189 = vpop.f32.mrf.mxu0
  %v190 = vadd.f32 0.0, %v189
  %v191 = vpop.f32.mrf.mxu0
  %192 = vmatprep.mubr.f32.mxu0 0.0
  %193 = vmatmul.mubr.f32.gmra.mxu0 %v95
  %v194 = vpop.f32.mrf.mxu0
  %v195 = vadd.f32 0.0, %v194
  %v196 = vpop.f32.mrf.mxu0
  %197 = vmatprep.mubr.f32.mxu0 0.0
  %198 = vmatmul.mubr.f32.gmra.mxu0 %v98
  %v199 = vpop.f32.mrf.mxu0
  %v200 = vadd.f32 0.0, %v199
  %v201 = vpop.f32.mrf.mxu0
  %202 = vmatprep.mubr.f32.mxu0 0.0
  %203 = vmatmul.mubr.f32.gmra.mxu0 %v101
  %v204 = vpop.f32.mrf.mxu0
  %v205 = vadd.f32 0.0, %v204
  %v206 = vpop.f32.mrf.mxu0
  %207 = vdwg.mxu0
  %vm208 = vcmask 261120
  %v210 = vsel %vm208, %v66, 0
  %212 = vmatprep.subr.mxu0 0.0
  %213 = vmatpush1.msra.mxu0 0.0
  %214 = vmatprep.subr.mxu0 0.0
  %215 = vmatpush1.msra.mxu0 0.0
  %216 = vmatprep.subr.mxu0 0.0
  %217 = vmatpush1.msra.mxu0 0.0
  %218 = vmatprep.subr.mxu0 0.0
  %219 = vmatpush1.msra.mxu0 0.0
  %220 = vmatprep.subr.mxu0 0.0
  %221 = vmatpush1.msra.mxu0 0.0
  %222 = vmatprep.subr.mxu0 0.0
  %223 = vmatpush1.msra.mxu0 0.0
  %224 = vmatprep.subr.mxu0 0.0
  %225 = vmatpush1.msra.mxu0 0.0
  %226 = vmatprep.subr.mxu0 0.0
  %227 = vmatpush1.msra.mxu0 0.0
  %228 = vmatprep.subr.mxu0 0.0
  %229 = vmatpush1.msra.mxu0 0.0
  %230 = vmatprep.subr.mxu0 0.0
  %231 = vmatpush1.msra.mxu0 0.0
  %232 = vmatprep.subr.mxu0 0.0
  %233 = vmatpush1.msra.mxu0 0.0
  %234 = vmatprep.subr.mxu0 0.0
  %235 = vmatpush1.msra.mxu0 0.0
  %236 = vmatprep.subr.mxu0 0.0
  %237 = vmatpush1.msra.mxu0 %v71
  %238 = vmatprep.subr.mxu0 0.0
  %239 = vmatpush1.msra.mxu0 %v70
  %240 = vmatprep.subr.mxu0 0.0
  %241 = vmatpush1.msra.mxu0 %v69
  %242 = vmatprep.subr.mxu0 0.0
  %243 = vmatpush1.msra.mxu0 %v68
  %244 = vmatprep.subr.mxu0 0.0
  %245 = vmatpush2.msra.mxu0 0.0
  %246 = vmatprep.subr.mxu0 0.0
  %247 = vmatpush2.msra.mxu0 0.0
  %248 = vmatprep.subr.mxu0 0.0
  %249 = vmatpush2.msra.mxu0 0.0
  %250 = vmatprep.subr.mxu0 0.0
  %251 = vmatpush2.msra.mxu0 0.0
  %252 = vmatprep.subr.mxu0 0.0
  %253 = vmatpush2.msra.mxu0 0.0
  %254 = vmatprep.subr.mxu0 0.0
  %255 = vmatpush2.msra.mxu0 0.0
  %256 = vmatprep.subr.mxu0 0.0
  %257 = vmatpush2.msra.mxu0 0.0
  %258 = vmatprep.subr.mxu0 0.0
  %259 = vmatpush2.msra.mxu0 0.0
  %260 = vmatprep.subr.mxu0 0.0
  %261 = vmatpush2.msra.mxu0 0.0
  %262 = vmatprep.subr.mxu0 0.0
  %263 = vmatpush2.msra.mxu0 0.0
  %264 = vmatprep.subr.mxu0 0.0
  %265 = vmatpush2.msra.mxu0 0.0
  %266 = vmatprep.subr.mxu0 0.0
  %267 = vmatpush2.msra.mxu0 0.0
  %268 = vmatprep.subr.mxu0 0.0
  %269 = vmatpush2.msra.mxu0 0.0
  %270 = vmatprep.subr.mxu0 0.0
  %271 = vmatpush2.msra.mxu0 0.0
  %272 = vmatprep.subr.mxu0 0.0
  %273 = vmatpush2.msra.mxu0 0.0
  %274 = vmatprep.subr.mxu0 0.0
  %275 = vmatpush2.msra.mxu0 0.0
  %276 = vmatprep.mubr.f32.mxu0 0.0
  %277 = vmatmul.mubr.f32.gmra.mxu0 %v210
  %v278 = vpop.f32.mrf.mxu0
  %v279 = vadd.f32 0.0, %v278
  %v280 = vpop.f32.mrf.mxu0
  %281 = vdwg.mxu0
  %v283 = vcombine.high %v279, %v279
  %v285 = vunpack.c.l.s4 1966171168
  %v286 = vunpack.c.0.s8 %v285
  %v287 = vlaneseq
  %v288 = vshrl.u32 %v287, 7
  %v289 = vsub.s32 %v286, %v288
  %v290 = vrot.slane %v279, %v289
  %v292 = vunpack.c.l.s4 1966171168
  %v293 = vunpack.c.0.s8 %v292
  %v294 = vlaneseq
  %v295 = vshrl.u32 %v294, 7
  %v296 = vsub.s32 %v293, %v295
  %v297 = vrot.slane %v283, %v296
  %v298 = vcombine.high %v290, %v290
  %v299 = vcombine.high %v297, %v297
  %v301 = vunpack.c.l.s4 1966171168
  %v302 = vunpack.c.0.s8 %v301
  %v303 = vlaneseq
  %v304 = vshrl.u32 %v303, 7
  %v305 = vsub.s32 %v302, %v304
  %v306 = vrot.slane %v290, %v305
  %v308 = vunpack.c.l.s4 1966171168
  %v309 = vunpack.c.0.s8 %v308
  %v310 = vlaneseq
  %v311 = vshrl.u32 %v310, 7
  %v312 = vsub.s32 %v309, %v311
  %v313 = vrot.slane %v297, %v312
  %v315 = vunpack.c.l.s4 1966171168
  %v316 = vunpack.c.0.s8 %v315
  %v317 = vlaneseq
  %v318 = vshrl.u32 %v317, 7
  %v319 = vsub.s32 %v316, %v318
  %v320 = vrot.slane %v298, %v319
  %v322 = vunpack.c.l.s4 1966171168
  %v323 = vunpack.c.0.s8 %v322
  %v324 = vlaneseq
  %v325 = vshrl.u32 %v324, 7
  %v326 = vsub.s32 %v323, %v325
  %v327 = vrot.slane %v299, %v326
  %v328 = vcombine.high %v306, %v306
  %v329 = vcombine.high %v313, %v313
  %v330 = vcombine.high %v320, %v320
  %v331 = vcombine.high %v327, %v327
  %v332 = vlaneseq
  %v333 = vshrl.u32 %v332, 7
  %v334 = vsub.s32 0, %v333
  %v335 = vrot.slane %v306, %v334
  %v336 = vlaneseq
  %v337 = vshrl.u32 %v336, 7
  %v338 = vsub.s32 0, %v337
  %v339 = vrot.slane %v320, %v338
  %v340 = vlaneseq
  %v341 = vshrl.u32 %v340, 7
  %v342 = vsub.s32 0, %v341
  %v343 = vrot.slane %v328, %v342
  %v344 = vlaneseq
  %v345 = vshrl.u32 %v344, 7
  %v346 = vsub.s32 0, %v345
  %v347 = vrot.slane %v330, %v346
  %v348 = vlaneseq
  %v349 = vshrl.u32 %v348, 7
  %v350 = vsub.s32 0, %v349
  %v351 = vrot.slane %v313, %v350
  %v352 = vlaneseq
  %v353 = vshrl.u32 %v352, 7
  %v354 = vsub.s32 0, %v353
  %v355 = vrot.slane %v327, %v354
  %v356 = vlaneseq
  %v357 = vshrl.u32 %v356, 7
  %v358 = vsub.s32 0, %v357
  %v359 = vrot.slane %v329, %v358
  %v360 = vlaneseq
  %v361 = vshrl.u32 %v360, 7
  %v362 = vsub.s32 0, %v361
  %v363 = vrot.slane %v331, %v362
  %v372 = vadd.f32 %v170, %v335
  %v373 = vadd.f32 %v175, %v339
  %v374 = vadd.f32 %v180, %v343
  %v375 = vadd.f32 %v185, %v347
  %v376 = vadd.f32 %v190, %v351
  %v377 = vadd.f32 %v195, %v355
  %v378 = vadd.f32 %v200, %v359
  %v379 = vadd.f32 %v205, %v363
  %v380 = vld [vmem:[%s6] sm:$0x1]
  %v382 = vlaneseq
  %v383 = vshrl.u32 %v382, 7
  %v384 = vsub.s32 0, %v383
  %v385 = vrot.slane %v380, %v384
  %v387 = vadd.f32 %v372, %v385
  %v388 = vadd.f32 %v373, %v385
  %v389 = vadd.f32 %v374, %v385
  %v390 = vadd.f32 %v375, %v385
  %v391 = vadd.f32 %v376, %v385
  %v392 = vadd.f32 %v377, %v385
  %v393 = vadd.f32 %v378, %v385
  %v394 = vadd.f32 %v379, %v385
  %vm395 = vcmp.gt.f32.partialorder %v387, 0.0
  %vm396 = vcmp.gt.f32.partialorder %v388, 0.0
  %vm397 = vcmp.gt.f32.partialorder %v389, 0.0
  %vm398 = vcmp.gt.f32.partialorder %v390, 0.0
  %vm399 = vcmp.gt.f32.partialorder %v391, 0.0
  %vm400 = vcmp.gt.f32.partialorder %v392, 0.0
  %vm401 = vcmp.gt.f32.partialorder %v393, 0.0
  %vm402 = vcmp.gt.f32.partialorder %v394, 0.0
  %v403 = vmul.f32 %v387, 0.01
  %v404 = vmul.f32 %v388, 0.01
  %v405 = vmul.f32 %v389, 0.01
  %v406 = vmul.f32 %v390, 0.01
  %v407 = vmul.f32 %v391, 0.01
  %v408 = vmul.f32 %v392, 0.01
  %v409 = vmul.f32 %v393, 0.01
  %v410 = vmul.f32 %v394, 0.01
  %v411 = vsel %vm395, %v387, %v403
  %v412 = vsel %vm396, %v388, %v404
  %v413 = vsel %vm397, %v389, %v405
  %v414 = vsel %vm398, %v390, %v406
  %v415 = vsel %vm399, %v391, %v407
  %v416 = vsel %vm400, %v392, %v408
  %v417 = vsel %vm401, %v393, %v409
  %v418 = vsel %vm402, %v394, %v410
  %v419 = vld [vmem:[%s7] sm:$0x1]
  %v421 = vlaneseq
  %v422 = vshrl.u32 %v421, 7
  %v423 = vsub.s32 0, %v422
  %v424 = vrot.slane %v419, %v423
  %v426 = vmul.f32 %v411, %v424
  %v427 = vmul.f32 %v412, %v424
  %v428 = vmul.f32 %v413, %v424
  %v429 = vmul.f32 %v414, %v424
  %v430 = vmul.f32 %v415, %v424
  %v431 = vmul.f32 %v416, %v424
  %v432 = vmul.f32 %v417, %v424
  %v433 = vmul.f32 %v418, %v424
  %v434 = vsel %vm208, %v426, 0.0
  %435 = vadd.xlane.f32.xlu0 %v434
  %v436 = vpop.xlane.xlu0 %435
  %v437 = vsel %vm208, %v427, 0.0
  %438 = vadd.xlane.f32.xlu0 %v437
  %v439 = vpop.xlane.xlu0 %438
  %v440 = vsel %vm208, %v428, 0.0
  %441 = vadd.xlane.f32.xlu0 %v440
  %v442 = vpop.xlane.xlu0 %441
  %v443 = vsel %vm208, %v429, 0.0
  %444 = vadd.xlane.f32.xlu0 %v443
  %v445 = vpop.xlane.xlu0 %444
  %v446 = vsel %vm208, %v430, 0.0
  %447 = vadd.xlane.f32.xlu0 %v446
  %v448 = vpop.xlane.xlu0 %447
  %v449 = vsel %vm208, %v431, 0.0
  %450 = vadd.xlane.f32.xlu0 %v449
  %v451 = vpop.xlane.xlu0 %450
  %v452 = vsel %vm208, %v432, 0.0
  %453 = vadd.xlane.f32.xlu0 %v452
  %v454 = vpop.xlane.xlu0 %453
  %v455 = vsel %vm208, %v433, 0.0
  %456 = vadd.xlane.f32.xlu0 %v455
  %v457 = vpop.xlane.xlu0 %456
  %v458 = vld [vmem:[#allocation2] sm:$0x1]
  %v460 = vlaneseq
  %v461 = vshrl.u32 %v460, 7
  %v462 = vsub.s32 0, %v461
  %v463 = vrot.slane %v458, %v462
  %v465 = vadd.f32 %v436, %v463
  %v466 = vadd.f32 %v439, %v463
  %v467 = vadd.f32 %v442, %v463
  %v468 = vadd.f32 %v445, %v463
  %v469 = vadd.f32 %v448, %v463
  %v470 = vadd.f32 %v451, %v463
  %v471 = vadd.f32 %v454, %v463
  %v472 = vadd.f32 %v457, %v463
  %vm473 = vcmask 7168
  %v474 = vsel %vm473, %v465, -inf
  %v475 = vrot.slane %v474, 4
  %v476 = vmax.f32 %v474, %v475
  %v477 = vrot.slane %v476, 2
  %v478 = vmax.f32 %v476, %v477
  %v479 = vrot.slane %v478, 1
  %v480 = vmax.f32 %v478, %v479
  %v481 = vsel %vm473, %v466, -inf
  %v482 = vrot.slane %v481, 4
  %v483 = vmax.f32 %v481, %v482
  %v484 = vrot.slane %v483, 2
  %v485 = vmax.f32 %v483, %v484
  %v486 = vrot.slane %v485, 1
  %v487 = vmax.f32 %v485, %v486
  %v488 = vsel %vm473, %v467, -inf
  %v489 = vrot.slane %v488, 4
  %v490 = vmax.f32 %v488, %v489
  %v491 = vrot.slane %v490, 2
  %v492 = vmax.f32 %v490, %v491
  %v493 = vrot.slane %v492, 1
  %v494 = vmax.f32 %v492, %v493
  %v495 = vsel %vm473, %v468, -inf
  %v496 = vrot.slane %v495, 4
  %v497 = vmax.f32 %v495, %v496
  %v498 = vrot.slane %v497, 2
  %v499 = vmax.f32 %v497, %v498
  %v500 = vrot.slane %v499, 1
  %v501 = vmax.f32 %v499, %v500
  %v502 = vsel %vm473, %v469, -inf
  %v503 = vrot.slane %v502, 4
  %v504 = vmax.f32 %v502, %v503
  %v505 = vrot.slane %v504, 2
  %v506 = vmax.f32 %v504, %v505
  %v507 = vrot.slane %v506, 1
  %v508 = vmax.f32 %v506, %v507
  %v509 = vsel %vm473, %v470, -inf
  %v510 = vrot.slane %v509, 4
  %v511 = vmax.f32 %v509, %v510
  %v512 = vrot.slane %v511, 2
  %v513 = vmax.f32 %v511, %v512
  %v514 = vrot.slane %v513, 1
  %v515 = vmax.f32 %v513, %v514
  %v516 = vsel %vm473, %v471, -inf
  %v517 = vrot.slane %v516, 4
  %v518 = vmax.f32 %v516, %v517
  %v519 = vrot.slane %v518, 2
  %v520 = vmax.f32 %v518, %v519
  %v521 = vrot.slane %v520, 1
  %v522 = vmax.f32 %v520, %v521
  %v523 = vsel %vm473, %v472, -inf
  %v524 = vrot.slane %v523, 4
  %v525 = vmax.f32 %v523, %v524
  %v526 = vrot.slane %v525, 2
  %v527 = vmax.f32 %v525, %v526
  %v528 = vrot.slane %v527, 1
  %v529 = vmax.f32 %v527, %v528
  %v530 = vsub.f32 %v465, %v480
  %v531 = vsub.f32 %v466, %v487
  %v532 = vsub.f32 %v467, %v494
  %v533 = vsub.f32 %v468, %v501
  %v534 = vsub.f32 %v469, %v508
  %v535 = vsub.f32 %v470, %v515
  %v536 = vsub.f32 %v471, %v522
  %v537 = vsub.f32 %v472, %v529
  %v538 = vmul.f32 %v530, 1.442695
  %v539 = vpow.pop %v538
  %v540 = vmul.f32 %v531, 1.442695
  %v541 = vpow.pop %v540
  %v542 = vmul.f32 %v532, 1.442695
  %v543 = vpow.pop %v542
  %v544 = vmul.f32 %v533, 1.442695
  %v545 = vpow.pop %v544
  %v546 = vmul.f32 %v534, 1.442695
  %v547 = vpow.pop %v546
  %v548 = vmul.f32 %v535, 1.442695
  %v549 = vpow.pop %v548
  %v550 = vmul.f32 %v536, 1.442695
  %v551 = vpow.pop %v550
  %v552 = vmul.f32 %v537, 1.442695
  %v553 = vpow.pop %v552
  %v554 = vsel %vm473, %v539, 0.0
  %v555 = vrot.slane %v554, 4
  %v556 = vadd.f32 %v554, %v555
  %v557 = vrot.slane %v556, 2
  %v558 = vadd.f32 %v556, %v557
  %v559 = vrot.slane %v558, 1
  %v560 = vadd.f32 %v558, %v559
  %v561 = vsel %vm473, %v541, 0.0
  %v562 = vrot.slane %v561, 4
  %v563 = vadd.f32 %v561, %v562
  %v564 = vrot.slane %v563, 2
  %v565 = vadd.f32 %v563, %v564
  %v566 = vrot.slane %v565, 1
  %v567 = vadd.f32 %v565, %v566
  %v568 = vsel %vm473, %v543, 0.0
  %v569 = vrot.slane %v568, 4
  %v570 = vadd.f32 %v568, %v569
  %v571 = vrot.slane %v570, 2
  %v572 = vadd.f32 %v570, %v571
  %v573 = vrot.slane %v572, 1
  %v574 = vadd.f32 %v572, %v573
  %v575 = vsel %vm473, %v545, 0.0
  %v576 = vrot.slane %v575, 4
  %v577 = vadd.f32 %v575, %v576
  %v578 = vrot.slane %v577, 2
  %v579 = vadd.f32 %v577, %v578
  %v580 = vrot.slane %v579, 1
  %v581 = vadd.f32 %v579, %v580
  %v582 = vsel %vm473, %v547, 0.0
  %v583 = vrot.slane %v582, 4
  %v584 = vadd.f32 %v582, %v583
  %v585 = vrot.slane %v584, 2
  %v586 = vadd.f32 %v584, %v585
  %v587 = vrot.slane %v586, 1
  %v588 = vadd.f32 %v586, %v587
  %v589 = vsel %vm473, %v549, 0.0
  %v590 = vrot.slane %v589, 4
  %v591 = vadd.f32 %v589, %v590
  %v592 = vrot.slane %v591, 2
  %v593 = vadd.f32 %v591, %v592
  %v594 = vrot.slane %v593, 1
  %v595 = vadd.f32 %v593, %v594
  %v596 = vsel %vm473, %v551, 0.0
  %v597 = vrot.slane %v596, 4
  %v598 = vadd.f32 %v596, %v597
  %v599 = vrot.slane %v598, 2
  %v600 = vadd.f32 %v598, %v599
  %v601 = vrot.slane %v600, 1
  %v602 = vadd.f32 %v600, %v601
  %v603 = vsel %vm473, %v553, 0.0
  %v604 = vrot.slane %v603, 4
  %v605 = vadd.f32 %v603, %v604
  %v606 = vrot.slane %v605, 2
  %v607 = vadd.f32 %v605, %v606
  %v608 = vrot.slane %v607, 1
  %v609 = vadd.f32 %v607, %v608
  %v610 = vrcp.pop %v560
  %v611 = vmul.f32 %v539, %v610
  %v612 = vrcp.pop %v567
  %v613 = vmul.f32 %v541, %v612
  %v614 = vrcp.pop %v574
  %v615 = vmul.f32 %v543, %v614
  %v616 = vrcp.pop %v581
  %v617 = vmul.f32 %v545, %v616
  %v618 = vrcp.pop %v588
  %v619 = vmul.f32 %v547, %v618
  %v620 = vrcp.pop %v595
  %v621 = vmul.f32 %v549, %v620
  %v622 = vrcp.pop %v602
  %v623 = vmul.f32 %v551, %v622
  %v624 = vrcp.pop %v609
  %v625 = vmul.f32 %v553, %v624
  %627 = vset.pattern.permute.xlu0 0
  %628 = vperm.xlu0 %627, %v611
  %v629 = vpop.permute.xlu0 %628
  %632 = vset.pattern.permute.xlu0 0
  %633 = vperm.xlu0 %632, %v613
  %v634 = vpop.permute.xlu0 %633
  %637 = vset.pattern.permute.xlu0 0
  %638 = vperm.xlu0 %637, %v615
  %v639 = vpop.permute.xlu0 %638
  %642 = vset.pattern.permute.xlu0 0
  %643 = vperm.xlu0 %642, %v617
  %v644 = vpop.permute.xlu0 %643
  %647 = vset.pattern.permute.xlu0 0
  %648 = vperm.xlu0 %647, %v619
  %v649 = vpop.permute.xlu0 %648
  %652 = vset.pattern.permute.xlu0 0
  %653 = vperm.xlu0 %652, %v621
  %v654 = vpop.permute.xlu0 %653
  %657 = vset.pattern.permute.xlu0 0
  %658 = vperm.xlu0 %657, %v623
  %v659 = vpop.permute.xlu0 %658
  %662 = vset.pattern.permute.xlu0 0
  %663 = vperm.xlu0 %662, %v625
  %v664 = vpop.permute.xlu0 %663
  %v666 = vmul.f32 %v629, %v58
  %v667 = vmul.f32 %v634, %v59
  %v668 = vmul.f32 %v639, %v60
  %v669 = vmul.f32 %v644, %v61
  %v670 = vmul.f32 %v649, %v62
  %v671 = vmul.f32 %v654, %v63
  %v672 = vmul.f32 %v659, %v64
  %v673 = vmul.f32 %v664, %v65
  %v674 = vsel %vm78, %v666, 0.0
  %v675 = vrot.slane %v674, 4
  %v676 = vadd.f32 %v674, %v675
  %v677 = vrot.slane %v676, 2
  %v678 = vadd.f32 %v676, %v677
  %v679 = vrot.slane %v678, 1
  %v680 = vadd.f32 %v678, %v679
  %v681 = vsel %vm78, %v667, 0.0
  %v682 = vrot.slane %v681, 4
  %v683 = vadd.f32 %v681, %v682
  %v684 = vrot.slane %v683, 2
  %v685 = vadd.f32 %v683, %v684
  %v686 = vrot.slane %v685, 1
  %v687 = vadd.f32 %v685, %v686
  %v688 = vsel %vm78, %v668, 0.0
  %v689 = vrot.slane %v688, 4
  %v690 = vadd.f32 %v688, %v689
  %v691 = vrot.slane %v690, 2
  %v692 = vadd.f32 %v690, %v691
  %v693 = vrot.slane %v692, 1
  %v694 = vadd.f32 %v692, %v693
  %v695 = vsel %vm78, %v669, 0.0
  %v696 = vrot.slane %v695, 4
  %v697 = vadd.f32 %v695, %v696
  %v698 = vrot.slane %v697, 2
  %v699 = vadd.f32 %v697, %v698
  %v700 = vrot.slane %v699, 1
  %v701 = vadd.f32 %v699, %v700
  %v702 = vsel %vm78, %v670, 0.0
  %v703 = vrot.slane %v702, 4
  %v704 = vadd.f32 %v702, %v703
  %v705 = vrot.slane %v704, 2
  %v706 = vadd.f32 %v704, %v705
  %v707 = vrot.slane %v706, 1
  %v708 = vadd.f32 %v706, %v707
  %v709 = vsel %vm78, %v671, 0.0
  %v710 = vrot.slane %v709, 4
  %v711 = vadd.f32 %v709, %v710
  %v712 = vrot.slane %v711, 2
  %v713 = vadd.f32 %v711, %v712
  %v714 = vrot.slane %v713, 1
  %v715 = vadd.f32 %v713, %v714
  %v716 = vsel %vm78, %v672, 0.0
  %v717 = vrot.slane %v716, 4
  %v718 = vadd.f32 %v716, %v717
  %v719 = vrot.slane %v718, 2
  %v720 = vadd.f32 %v718, %v719
  %v721 = vrot.slane %v720, 1
  %v722 = vadd.f32 %v720, %v721
  %v723 = vsel %vm78, %v673, 0.0
  %v724 = vrot.slane %v723, 4
  %v725 = vadd.f32 %v723, %v724
  %v726 = vrot.slane %v725, 2
  %v727 = vadd.f32 %v725, %v726
  %v728 = vrot.slane %v727, 1
  %v729 = vadd.f32 %v727, %v728
  %v730 = vld [vmem:[%s1] sm:$0xff]
  %v731 = vlaneseq
  %v732 = vand.u32 %v731, 127
  %733 = vset.pattern.permute.xlu0 0
  %734 = vperm.xlu0 %733, %v730
  %v735 = vpop.permute.xlu0 %734
  %vm736 = vcmp.eq.s32.totalorder %v735, %v732
  %v737 = vsel %vm736, 1, 0
  %v738 = vcvt.s32.f32 %v737
  %v739 = vld [vmem:[%s4] sm:$0xff]
  %v740 = vld [vmem:[%s4 + $0x8] sm:$0xff]
  %v741 = vld [vmem:[%s4 + $0x10] sm:$0xff]
  %v742 = vld [vmem:[%s4 + $0x18] sm:$0xff]
  %v743 = vld [vmem:[%s4 + $0x20] sm:$0xff]
  %vm744 = vcmask 326656
  %v746 = vsel %vm744, %v738, 0
  %748 = vmatprep.subr.mxu0 0.0
  %749 = vmatpush1.msra.mxu0 0.0
  %750 = vmatprep.subr.mxu0 0.0
  %751 = vmatpush1.msra.mxu0 0.0
  %752 = vmatprep.subr.mxu0 0.0
  %753 = vmatpush1.msra.mxu0 0.0
  %754 = vmatprep.subr.mxu0 0.0
  %755 = vmatpush1.msra.mxu0 0.0
  %756 = vmatprep.subr.mxu0 0.0
  %757 = vmatpush1.msra.mxu0 0.0
  %758 = vmatprep.subr.mxu0 0.0
  %759 = vmatpush1.msra.mxu0 0.0
  %760 = vmatprep.subr.mxu0 0.0
  %761 = vmatpush1.msra.mxu0 0.0
  %762 = vmatprep.subr.mxu0 0.0
  %763 = vmatpush1.msra.mxu0 0.0
  %764 = vmatprep.subr.mxu0 0.0
  %765 = vmatpush1.msra.mxu0 0.0
  %766 = vmatprep.subr.mxu0 0.0
  %767 = vmatpush1.msra.mxu0 0.0
  %768 = vmatprep.subr.mxu0 0.0
  %769 = vmatpush1.msra.mxu0 0.0
  %770 = vmatprep.subr.mxu0 0.0
  %771 = vmatpush1.msra.mxu0 %v743
  %772 = vmatprep.subr.mxu0 0.0
  %773 = vmatpush1.msra.mxu0 %v742
  %774 = vmatprep.subr.mxu0 0.0
  %775 = vmatpush1.msra.mxu0 %v741
  %776 = vmatprep.subr.mxu0 0.0
  %777 = vmatpush1.msra.mxu0 %v740
  %778 = vmatprep.subr.mxu0 0.0
  %779 = vmatpush1.msra.mxu0 %v739
  %780 = vmatprep.subr.mxu0 0.0
  %781 = vmatpush2.msra.mxu0 0.0
  %782 = vmatprep.subr.mxu0 0.0
  %783 = vmatpush2.msra.mxu0 0.0
  %784 = vmatprep.subr.mxu0 0.0
  %785 = vmatpush2.msra.mxu0 0.0
  %786 = vmatprep.subr.mxu0 0.0
  %787 = vmatpush2.msra.mxu0 0.0
  %788 = vmatprep.subr.mxu0 0.0
  %789 = vmatpush2.msra.mxu0 0.0
  %790 = vmatprep.subr.mxu0 0.0
  %791 = vmatpush2.msra.mxu0 0.0
  %792 = vmatprep.subr.mxu0 0.0
  %793 = vmatpush2.msra.mxu0 0.0
  %794 = vmatprep.subr.mxu0 0.0
  %795 = vmatpush2.msra.mxu0 0.0
  %796 = vmatprep.subr.mxu0 0.0
  %797 = vmatpush2.msra.mxu0 0.0
  %798 = vmatprep.subr.mxu0 0.0
  %799 = vmatpush2.msra.mxu0 0.0
  %800 = vmatprep.subr.mxu0 0.0
  %801 = vmatpush2.msra.mxu0 0.0
  %802 = vmatprep.subr.mxu0 0.0
  %803 = vmatpush2.msra.mxu0 0.0
  %804 = vmatprep.subr.mxu0 0.0
  %805 = vmatpush2.msra.mxu0 0.0
  %806 = vmatprep.subr.mxu0 0.0
  %807 = vmatpush2.msra.mxu0 0.0
  %808 = vmatprep.subr.mxu0 0.0
  %809 = vmatpush2.msra.mxu0 0.0
  %810 = vmatprep.subr.mxu0 0.0
  %811 = vmatpush2.msra.mxu0 0.0
  %812 = vmatprep.mubr.f32.mxu0 0.0
  %813 = vmatmul.mubr.f32.gmra.mxu0 %v746
  %v814 = vpop.f32.mrf.mxu0
  %v815 = vadd.f32 0.0, %v814
  %v816 = vpop.f32.mrf.mxu0
  %817 = vdwg.mxu0
  %v818 = vld [vmem:[%s9] sm:$0xff]
  %v819 = vld [vmem:[%s9 + $0x8] sm:$0xff]
  %v820 = vld [vmem:[%s9 + $0x10] sm:$0xff]
  %v821 = vld [vmem:[%s9 + $0x18] sm:$0xff]
  %v822 = vld [vmem:[%s9 + $0x20] sm:$0xff]
  %v823 = vld [vmem:[%s9 + $0x28] sm:$0xff]
  %v824 = vld [vmem:[%s9 + $0x30] sm:$0xff]
  %v825 = vld [vmem:[%s9 + $0x38] sm:$0xff]
  %vm834 = vcmask 1041409
  %v835 = vsel %vm834, %v687, %v680
  %vm836 = vcmask 1042434
  %v837 = vsel %vm836, %v694, %v835
  %vm838 = vcmask 1043459
  %v839 = vsel %vm838, %v701, %v837
  %vm840 = vcmask 1044484
  %v841 = vsel %vm840, %v708, %v839
  %vm842 = vcmask 1045509
  %v843 = vsel %vm842, %v715, %v841
  %vm844 = vcmask 1046534
  %v845 = vsel %vm844, %v722, %v843
  %vm846 = vcmask 1047559
  %v847 = vsel %vm846, %v729, %v845
  %v848 = vsel %vm78, %v847, 0
  %850 = vmatprep.subr.mxu0 0.0
  %851 = vmatpush1.msra.mxu0 0.0
  %852 = vmatprep.subr.mxu0 0.0
  %853 = vmatpush1.msra.mxu0 0.0
  %854 = vmatprep.subr.mxu0 0.0
  %855 = vmatpush1.msra.mxu0 0.0
  %856 = vmatprep.subr.mxu0 0.0
  %857 = vmatpush1.msra.mxu0 0.0
  %858 = vmatprep.subr.mxu0 0.0
  %859 = vmatpush1.msra.mxu0 0.0
  %860 = vmatprep.subr.mxu0 0.0
  %861 = vmatpush1.msra.mxu0 0.0
  %862 = vmatprep.subr.mxu0 0.0
  %863 = vmatpush1.msra.mxu0 0.0
  %864 = vmatprep.subr.mxu0 0.0
  %865 = vmatpush1.msra.mxu0 0.0
  %866 = vmatprep.subr.mxu0 0.0
  %867 = vmatpush1.msra.mxu0 0.0
  %868 = vmatprep.subr.mxu0 0.0
  %869 = vmatpush1.msra.mxu0 0.0
  %870 = vmatprep.subr.mxu0 0.0
  %871 = vmatpush1.msra.mxu0 %v825
  %872 = vmatprep.subr.mxu0 0.0
  %873 = vmatpush1.msra.mxu0 %v824
  %874 = vmatprep.subr.mxu0 0.0
  %875 = vmatpush1.msra.mxu0 %v823
  %876 = vmatprep.subr.mxu0 0.0
  %877 = vmatpush1.msra.mxu0 %v822
  %878 = vmatprep.subr.mxu0 0.0
  %879 = vmatpush1.msra.mxu0 %v821
  %880 = vmatprep.subr.mxu0 0.0
  %881 = vmatpush1.msra.mxu0 %v820
  %882 = vmatprep.subr.mxu0 0.0
  %883 = vmatpush2.msra.mxu0 0.0
  %884 = vmatprep.subr.mxu0 0.0
  %885 = vmatpush2.msra.mxu0 0.0
  %886 = vmatprep.subr.mxu0 0.0
  %887 = vmatpush2.msra.mxu0 0.0
  %888 = vmatprep.subr.mxu0 0.0
  %889 = vmatpush2.msra.mxu0 0.0
  %890 = vmatprep.subr.mxu0 0.0
  %891 = vmatpush2.msra.mxu0 0.0
  %892 = vmatprep.subr.mxu0 0.0
  %893 = vmatpush2.msra.mxu0 0.0
  %894 = vmatprep.subr.mxu0 0.0
  %895 = vmatpush2.msra.mxu0 0.0
  %896 = vmatprep.subr.mxu0 0.0
  %897 = vmatpush2.msra.mxu0 0.0
  %898 = vmatprep.subr.mxu0 0.0
  %899 = vmatpush2.msra.mxu0 0.0
  %900 = vmatprep.subr.mxu0 0.0
  %901 = vmatpush2.msra.mxu0 0.0
  %902 = vmatprep.subr.mxu0 0.0
  %903 = vmatpush2.msra.mxu0 0.0
  %904 = vmatprep.subr.mxu0 0.0
  %905 = vmatpush2.msra.mxu0 0.0
  %906 = vmatprep.subr.mxu0 0.0
  %907 = vmatpush2.msra.mxu0 0.0
  %908 = vmatprep.subr.mxu0 0.0
  %909 = vmatpush2.msra.mxu0 0.0
  %910 = vmatprep.subr.mxu0 0.0
  %911 = vmatpush2.msra.mxu0 0.0
  %912 = vmatprep.subr.mxu0 0.0
  %913 = vmatpush2.msra.mxu0 0.0
  %914 = vmatprep.mubr.f32.mxu0 0.0
  %915 = vmatmul.mubr.f32.gmra.mxu0 %v848
  %v916 = vpop.f32.mrf.mxu0
  %v917 = vadd.f32 0.0, %v916
  %v918 = vpop.f32.mrf.mxu0
  %919 = vdwg.mxu0
  %vm920 = vcmask 130048
  %v922 = vsel %vm920, %v815, 0
  %924 = vmatprep.subr.mxu0 0.0
  %925 = vmatpush1.msra.mxu0 0.0
  %926 = vmatprep.subr.mxu0 0.0
  %927 = vmatpush1.msra.mxu0 0.0
  %928 = vmatprep.subr.mxu0 0.0
  %929 = vmatpush1.msra.mxu0 0.0
  %930 = vmatprep.subr.mxu0 0.0
  %931 = vmatpush1.msra.mxu0 0.0
  %932 = vmatprep.subr.mxu0 0.0
  %933 = vmatpush1.msra.mxu0 0.0
  %934 = vmatprep.subr.mxu0 0.0
  %935 = vmatpush1.msra.mxu0 0.0
  %936 = vmatprep.subr.mxu0 0.0
  %937 = vmatpush1.msra.mxu0 0.0
  %938 = vmatprep.subr.mxu0 0.0
  %939 = vmatpush1.msra.mxu0 0.0
  %940 = vmatprep.subr.mxu0 0.0
  %941 = vmatpush1.msra.mxu0 0.0
  %942 = vmatprep.subr.mxu0 0.0
  %943 = vmatpush1.msra.mxu0 0.0
  %944 = vmatprep.subr.mxu0 0.0
  %945 = vmatpush1.msra.mxu0 0.0
  %946 = vmatprep.subr.mxu0 0.0
  %947 = vmatpush1.msra.mxu0 0.0
  %948 = vmatprep.subr.mxu0 0.0
  %949 = vmatpush1.msra.mxu0 0.0
  %950 = vmatprep.subr.mxu0 0.0
  %951 = vmatpush1.msra.mxu0 0.0
  %952 = vmatprep.subr.mxu0 0.0
  %953 = vmatpush1.msra.mxu0 %v819
  %954 = vmatprep.subr.mxu0 0.0
  %955 = vmatpush1.msra.mxu0 %v818
  %956 = vmatprep.subr.mxu0 0.0
  %957 = vmatpush2.msra.mxu0 0.0
  %958 = vmatprep.subr.mxu0 0.0
  %959 = vmatpush2.msra.mxu0 0.0
  %960 = vmatprep.subr.mxu0 0.0
  %961 = vmatpush2.msra.mxu0 0.0
  %962 = vmatprep.subr.mxu0 0.0
  %963 = vmatpush2.msra.mxu0 0.0
  %964 = vmatprep.subr.mxu0 0.0
  %965 = vmatpush2.msra.mxu0 0.0
  %966 = vmatprep.subr.mxu0 0.0
  %967 = vmatpush2.msra.mxu0 0.0
  %968 = vmatprep.subr.mxu0 0.0
  %969 = vmatpush2.msra.mxu0 0.0
  %970 = vmatprep.subr.mxu0 0.0
  %971 = vmatpush2.msra.mxu0 0.0
  %972 = vmatprep.subr.mxu0 0.0
  %973 = vmatpush2.msra.mxu0 0.0
  %974 = vmatprep.subr.mxu0 0.0
  %975 = vmatpush2.msra.mxu0 0.0
  %976 = vmatprep.subr.mxu0 0.0
  %977 = vmatpush2.msra.mxu0 0.0
  %978 = vmatprep.subr.mxu0 0.0
  %979 = vmatpush2.msra.mxu0 0.0
  %980 = vmatprep.subr.mxu0 0.0
  %981 = vmatpush2.msra.mxu0 0.0
  %982 = vmatprep.subr.mxu0 0.0
  %983 = vmatpush2.msra.mxu0 0.0
  %984 = vmatprep.subr.mxu0 0.0
  %985 = vmatpush2.msra.mxu0 0.0
  %986 = vmatprep.subr.mxu0 0.0
  %987 = vmatpush2.msra.mxu0 0.0
  %988 = vmatprep.mubr.f32.mxu0 0.0
  %989 = vmatmul.mubr.f32.gmra.mxu0 %v922
  %v990 = vpop.f32.mrf.mxu0
  %v991 = vadd.f32 %v917, %v990
  %v992 = vpop.f32.mrf.mxu0
  %993 = vdwg.mxu0
  %v994 = vld [vmem:[%s10] sm:$0x1]
  %v996 = vlaneseq
  %v997 = vshrl.u32 %v996, 7
  %v998 = vsub.s32 0, %v997
  %v999 = vrot.slane %v994, %v998
  %v1001 = vadd.f32 %v991, %v999
  %v1002 = vmax.f32 %v1001, 0.0
  %v1003 = vld [vmem:[%s11] sm:$0xff]
  %v1004 = vld [vmem:[%s11 + $0x8] sm:$0xff]
  %v1005 = vld [vmem:[%s11 + $0x10] sm:$0xff]
  %v1006 = vld [vmem:[%s11 + $0x18] sm:$0xff]
  %v1007 = vld [vmem:[%s12] sm:$0xff]
  %v1008 = vld [vmem:[%s12 + $0x8] sm:$0xff]
  %v1009 = vld [vmem:[%s12 + $0x10] sm:$0xff]
  %v1010 = vld [vmem:[%s12 + $0x18] sm:$0xff]
  %1011 = vmatprep.subr.mxu0 0.0
  %1012 = vmatpush1.msra.mxu0 0.0
  %1013 = vmatprep.subr.mxu0 0.0
  %1014 = vmatpush1.msra.mxu0 0.0
  %1015 = vmatprep.subr.mxu0 0.0
  %1016 = vmatpush1.msra.mxu0 0.0
  %1017 = vmatprep.subr.mxu0 0.0
  %1018 = vmatpush1.msra.mxu0 0.0
  %1019 = vmatprep.subr.mxu0 0.0
  %1020 = vmatpush1.msra.mxu0 0.0
  %1021 = vmatprep.subr.mxu0 0.0
  %1022 = vmatpush1.msra.mxu0 0.0
  %1023 = vmatprep.subr.mxu0 0.0
  %1024 = vmatpush1.msra.mxu0 0.0
  %1025 = vmatprep.subr.mxu0 0.0
  %1026 = vmatpush1.msra.mxu0 0.0
  %1027 = vmatprep.subr.mxu0 0.0
  %1028 = vmatpush1.msra.mxu0 0.0
  %1029 = vmatprep.subr.mxu0 0.0
  %1030 = vmatpush1.msra.mxu0 0.0
  %1031 = vmatprep.subr.mxu0 0.0
  %1032 = vmatpush1.msra.mxu0 0.0
  %1033 = vmatprep.subr.mxu0 0.0
  %1034 = vmatpush1.msra.mxu0 0.0
  %1035 = vmatprep.subr.mxu0 0.0
  %1036 = vmatpush1.msra.mxu0 %v1010
  %1037 = vmatprep.subr.mxu0 0.0
  %1038 = vmatpush1.msra.mxu0 %v1009
  %1039 = vmatprep.subr.mxu0 0.0
  %1040 = vmatpush1.msra.mxu0 %v1008
  %1041 = vmatprep.subr.mxu0 0.0
  %1042 = vmatpush1.msra.mxu0 %v1007
  %1043 = vmatprep.subr.mxu0 0.0
  %1044 = vmatpush2.msra.mxu0 0.0
  %1045 = vmatprep.subr.mxu0 0.0
  %1046 = vmatpush2.msra.mxu0 0.0
  %1047 = vmatprep.subr.mxu0 0.0
  %1048 = vmatpush2.msra.mxu0 0.0
  %1049 = vmatprep.subr.mxu0 0.0
  %1050 = vmatpush2.msra.mxu0 0.0
  %1051 = vmatprep.subr.mxu0 0.0
  %1052 = vmatpush2.msra.mxu0 0.0
  %1053 = vmatprep.subr.mxu0 0.0
  %1054 = vmatpush2.msra.mxu0 0.0
  %1055 = vmatprep.subr.mxu0 0.0
  %1056 = vmatpush2.msra.mxu0 0.0
  %1057 = vmatprep.subr.mxu0 0.0
  %1058 = vmatpush2.msra.mxu0 0.0
  %1059 = vmatprep.subr.mxu0 0.0
  %1060 = vmatpush2.msra.mxu0 0.0
  %1061 = vmatprep.subr.mxu0 0.0
  %1062 = vmatpush2.msra.mxu0 0.0
  %1063 = vmatprep.subr.mxu0 0.0
  %1064 = vmatpush2.msra.mxu0 0.0
  %1065 = vmatprep.subr.mxu0 0.0
  %1066 = vmatpush2.msra.mxu0 0.0
  %1067 = vmatprep.subr.mxu0 0.0
  %1068 = vmatpush2.msra.mxu0 0.0
  %1069 = vmatprep.subr.mxu0 0.0
  %1070 = vmatpush2.msra.mxu0 0.0
  %1071 = vmatprep.subr.mxu0 0.0
  %1072 = vmatpush2.msra.mxu0 0.0
  %1073 = vmatprep.subr.mxu0 0.0
  %1074 = vmatpush2.msra.mxu0 0.0
  %1075 = vmatprep.mubr.f32.mxu0 0.0
  %1076 = vmatmul.mubr.f32.gmra.mxu0 %v210
  %v1077 = vpop.f32.mrf.mxu0
  %v1078 = vadd.f32 0.0, %v1077
  %v1079 = vpop.f32.mrf.mxu0
  %1080 = vdwg.mxu0
  %v1082 = vsel %vm208, %v1002, 0
  %1084 = vmatprep.subr.mxu0 0.0
  %1085 = vmatpush1.msra.mxu0 0.0
  %1086 = vmatprep.subr.mxu0 0.0
  %1087 = vmatpush1.msra.mxu0 0.0
  %1088 = vmatprep.subr.mxu0 0.0
  %1089 = vmatpush1.msra.mxu0 0.0
  %1090 = vmatprep.subr.mxu0 0.0
  %1091 = vmatpush1.msra.mxu0 0.0
  %1092 = vmatprep.subr.mxu0 0.0
  %1093 = vmatpush1.msra.mxu0 0.0
  %1094 = vmatprep.subr.mxu0 0.0
  %1095 = vmatpush1.msra.mxu0 0.0
  %1096 = vmatprep.subr.mxu0 0.0
  %1097 = vmatpush1.msra.mxu0 0.0
  %1098 = vmatprep.subr.mxu0 0.0
  %1099 = vmatpush1.msra.mxu0 0.0
  %1100 = vmatprep.subr.mxu0 0.0
  %1101 = vmatpush1.msra.mxu0 0.0
  %1102 = vmatprep.subr.mxu0 0.0
  %1103 = vmatpush1.msra.mxu0 0.0
  %1104 = vmatprep.subr.mxu0 0.0
  %1105 = vmatpush1.msra.mxu0 0.0
  %1106 = vmatprep.subr.mxu0 0.0
  %1107 = vmatpush1.msra.mxu0 0.0
  %1108 = vmatprep.subr.mxu0 0.0
  %1109 = vmatpush1.msra.mxu0 %v1006
  %1110 = vmatprep.subr.mxu0 0.0
  %1111 = vmatpush1.msra.mxu0 %v1005
  %1112 = vmatprep.subr.mxu0 0.0
  %1113 = vmatpush1.msra.mxu0 %v1004
  %1114 = vmatprep.subr.mxu0 0.0
  %1115 = vmatpush1.msra.mxu0 %v1003
  %1116 = vmatprep.subr.mxu0 0.0
  %1117 = vmatpush2.msra.mxu0 0.0
  %1118 = vmatprep.subr.mxu0 0.0
  %1119 = vmatpush2.msra.mxu0 0.0
  %1120 = vmatprep.subr.mxu0 0.0
  %1121 = vmatpush2.msra.mxu0 0.0
  %1122 = vmatprep.subr.mxu0 0.0
  %1123 = vmatpush2.msra.mxu0 0.0
  %1124 = vmatprep.subr.mxu0 0.0
  %1125 = vmatpush2.msra.mxu0 0.0
  %1126 = vmatprep.subr.mxu0 0.0
  %1127 = vmatpush2.msra.mxu0 0.0
  %1128 = vmatprep.subr.mxu0 0.0
  %1129 = vmatpush2.msra.mxu0 0.0
  %1130 = vmatprep.subr.mxu0 0.0
  %1131 = vmatpush2.msra.mxu0 0.0
  %1132 = vmatprep.subr.mxu0 0.0
  %1133 = vmatpush2.msra.mxu0 0.0
  %1134 = vmatprep.subr.mxu0 0.0
  %1135 = vmatpush2.msra.mxu0 0.0
  %1136 = vmatprep.subr.mxu0 0.0
  %1137 = vmatpush2.msra.mxu0 0.0
  %1138 = vmatprep.subr.mxu0 0.0
  %1139 = vmatpush2.msra.mxu0 0.0
  %1140 = vmatprep.subr.mxu0 0.0
  %1141 = vmatpush2.msra.mxu0 0.0
  %1142 = vmatprep.subr.mxu0 0.0
  %1143 = vmatpush2.msra.mxu0 0.0
  %1144 = vmatprep.subr.mxu0 0.0
  %1145 = vmatpush2.msra.mxu0 0.0
  %1146 = vmatprep.subr.mxu0 0.0
  %1147 = vmatpush2.msra.mxu0 0.0
  %1148 = vmatprep.mubr.f32.mxu0 0.0
  %1149 = vmatmul.mubr.f32.gmra.mxu0 %v1082
  %v1150 = vpop.f32.mrf.mxu0
  %v1151 = vadd.f32 %v1078, %v1150
  %v1152 = vpop.f32.mrf.mxu0
  %1153 = vdwg.mxu0
  %v1154 = vld [vmem:[%s13] sm:$0x1]
  %v1156 = vlaneseq
  %v1157 = vshrl.u32 %v1156, 7
  %v1158 = vsub.s32 0, %v1157
  %v1159 = vrot.slane %v1154, %v1158
  %v1161 = vadd.f32 %v1151, %v1159
  %v1162 = vxor.u32 %v1161, 2147483648
  %v1163 = vmul.f32 %v1162, 1.442695
  %v1164 = vpow.pop %v1163
  %v1165 = vadd.f32 %v1164, 1.0
  %v1166 = vrcp.pop %v1165
  %v1167 = vmul.f32 1.0, %v1166
  %v1168 = vtanh.pop %v1161
  %1170 = vrot.lane.b32.xlu0 %v67, 32
  %v1171 = vpop.permute.xlu0 %1170
  %v1173 = vmul.f32 %v1167, %v1171
  %1175 = vrot.lane.b32.xlu0 %v1168, 64
  %v1176 = vpop.permute.xlu0 %1175
  %v1178 = vmul.f32 %v1167, %v1176
  %1180 = vrot.lane.b32.xlu0 %v1178, 32
  %v1181 = vpop.permute.xlu0 %1180
  %v1183 = vadd.f32 %v1173, %v1181
  %v1184 = vtanh.pop %v1183
  %1186 = vrot.lane.b32.xlu0 %v1184, 64
  %v1187 = vpop.permute.xlu0 %1186
  %v1189 = vmul.f32 %v1167, %v1187
  %v1190 = vld [vmem:[%s14] sm:$0xff]
  %v1191 = vld [vmem:[%s14 + $0x8] sm:$0xff]
  %v1192 = vld [vmem:[%s14 + $0x10] sm:$0xff]
  %v1193 = vld [vmem:[%s14 + $0x18] sm:$0xff]
  %v1194 = vld [vmem:[%s15] sm:$0x1]
  %v1196 = vlaneseq
  %v1197 = vshrl.u32 %v1196, 7
  %v1198 = vsub.s32 0, %v1197
  %v1199 = vrot.slane %v1194, %v1198
  %1202 = vrot.lane.b32.xlu0 %v1189, 32
  %v1203 = vpop.permute.xlu0 %1202
  %v1204 = vsel %vm208, %v1203, 0
  %1206 = vmatprep.subr.mxu0 0.0
  %1207 = vmatpush1.msra.mxu0 0.0
  %1208 = vmatprep.subr.mxu0 0.0
  %1209 = vmatpush1.msra.mxu0 0.0
  %1210 = vmatprep.subr.mxu0 0.0
  %1211 = vmatpush1.msra.mxu0 0.0
  %1212 = vmatprep.subr.mxu0 0.0
  %1213 = vmatpush1.msra.mxu0 0.0
  %1214 = vmatprep.subr.mxu0 0.0
  %1215 = vmatpush1.msra.mxu0 0.0
  %1216 = vmatprep.subr.mxu0 0.0
  %1217 = vmatpush1.msra.mxu0 0.0
  %1218 = vmatprep.subr.mxu0 0.0
  %1219 = vmatpush1.msra.mxu0 0.0
  %1220 = vmatprep.subr.mxu0 0.0
  %1221 = vmatpush1.msra.mxu0 0.0
  %1222 = vmatprep.subr.mxu0 0.0
  %1223 = vmatpush1.msra.mxu0 0.0
  %1224 = vmatprep.subr.mxu0 0.0
  %1225 = vmatpush1.msra.mxu0 0.0
  %1226 = vmatprep.subr.mxu0 0.0
  %1227 = vmatpush1.msra.mxu0 0.0
  %1228 = vmatprep.subr.mxu0 0.0
  %1229 = vmatpush1.msra.mxu0 0.0
  %1230 = vmatprep.subr.mxu0 0.0
  %1231 = vmatpush1.msra.mxu0 %v1193
  %1232 = vmatprep.subr.mxu0 0.0
  %1233 = vmatpush1.msra.mxu0 %v1192
  %1234 = vmatprep.subr.mxu0 0.0
  %1235 = vmatpush1.msra.mxu0 %v1191
  %1236 = vmatprep.subr.mxu0 0.0
  %1237 = vmatpush1.msra.mxu0 %v1190
  %1238 = vmatprep.subr.mxu0 0.0
  %1239 = vmatpush2.msra.mxu0 0.0
  %1240 = vmatprep.subr.mxu0 0.0
  %1241 = vmatpush2.msra.mxu0 0.0
  %1242 = vmatprep.subr.mxu0 0.0
  %1243 = vmatpush2.msra.mxu0 0.0
  %1244 = vmatprep.subr.mxu0 0.0
  %1245 = vmatpush2.msra.mxu0 0.0
  %1246 = vmatprep.subr.mxu0 0.0
  %1247 = vmatpush2.msra.mxu0 0.0
  %1248 = vmatprep.subr.mxu0 0.0
  %1249 = vmatpush2.msra.mxu0 0.0
  %1250 = vmatprep.subr.mxu0 0.0
  %1251 = vmatpush2.msra.mxu0 0.0
  %1252 = vmatprep.subr.mxu0 0.0
  %1253 = vmatpush2.msra.mxu0 0.0
  %1254 = vmatprep.subr.mxu0 0.0
  %1255 = vmatpush2.msra.mxu0 0.0
  %1256 = vmatprep.subr.mxu0 0.0
  %1257 = vmatpush2.msra.mxu0 0.0
  %1258 = vmatprep.subr.mxu0 0.0
  %1259 = vmatpush2.msra.mxu0 0.0
  %1260 = vmatprep.subr.mxu0 0.0
  %1261 = vmatpush2.msra.mxu0 0.0
  %1262 = vmatprep.subr.mxu0 0.0
  %1263 = vmatpush2.msra.mxu0 0.0
  %1264 = vmatprep.subr.mxu0 0.0
  %1265 = vmatpush2.msra.mxu0 0.0
  %1266 = vmatprep.subr.mxu0 0.0
  %1267 = vmatpush2.msra.mxu0 0.0
  %1268 = vmatprep.subr.mxu0 0.0
  %1269 = vmatpush2.msra.mxu0 0.0
  %1270 = vmatprep.mubr.f32.mxu0 0.0
  %1271 = vmatmul.mubr.f32.gmra.mxu0 %v1204
  %v1272 = vpop.f32.mrf.mxu0
  %v1273 = vadd.f32 %v1199, %v1272
  %v1274 = vpop.f32.mrf.mxu0
  %1275 = vdwg.mxu0
  %1276 = vst [vmem:[%s16] sm:$0xff] %v1273
  %1278 = vst.msk [vmem:[%s17] sm:$0xff] %vm208, %v1203
  %1280 = vrot.lane.b32.xlu0 %v1183, 96
  %v1281 = vpop.permute.xlu0 %1280
  %1283 = vst.msk [vmem:[%s18] sm:$0xff] %vm208, %v1281
  // Predicated region
  $region66: #{rnn_decoder_forward.1} parent=0 // pred_check
    _
  $region67: #{rnn_decoder_forward.1} parent=0 // pred_check_branch
    %1285 = sbr.rel (0) target = $region69
  $region68: #{rnn_decoder_forward.1} parent=0 // pred_region
    _
  $region69: #{rnn_decoder_forward.1} parent=0 // pred_fallthru
    _
  // Predicated region
  $region70: #{rnn_decoder_forward.1} parent=0 // pred_check
    _
  $region71: #{rnn_decoder_forward.1} parent=0 // pred_check_branch
    %1287 = sbr.rel (0) target = $region73
  $region72: #{rnn_decoder_forward.1} parent=0 // pred_region
    _
  $region73: #{rnn_decoder_forward.1} parent=0 // pred_fallthru
    _
  // Predicated region
  $region74: #{rnn_decoder_forward.1} parent=0 // pred_check
    _
  $region75: #{rnn_decoder_forward.1} parent=0 // pred_check_branch
    %1289 = sbr.rel (0) target = $region77
  $region76: #{rnn_decoder_forward.1} parent=0 // pred_region
    _
  $region77: #{rnn_decoder_forward.1} parent=0 // pred_fallthru
    _
  // Predicated region
  $region78: #{rnn_decoder_forward.1} parent=0 // pred_check
    _
  $region79: #{rnn_decoder_forward.1} parent=0 // pred_check_branch
    %1291 = sbr.rel (0) target = $region81
  $region80: #{rnn_decoder_forward.1} parent=0 // pred_region
    _
  $region81: #{rnn_decoder_forward.1} parent=0 // pred_fallthru
    _
  // Predicated region
  $region82: #{rnn_decoder_forward.1} parent=0 // pred_check
    _
  $region83: #{rnn_decoder_forward.1} parent=0 // pred_check_branch
    %1293 = sbr.rel (0) target = $region85
  $region84: #{rnn_decoder_forward.1} parent=0 // pred_region
    _
  $region85: #{rnn_decoder_forward.1} parent=0 // pred_fallthru
    _
  // Predicated region
  $region86: #{rnn_decoder_forward.1} parent=0 // pred_check
    _
  $region87: #{rnn_decoder_forward.1} parent=0 // pred_check_branch
    %1295 = sbr.rel (0) target = $region89
  $region88: #{rnn_decoder_forward.1} parent=0 // pred_region
    _
  $region89: #{rnn_decoder_forward.1} parent=0 // pred_fallthru
    _

</llo_original>
